<compile_context>
chip_gen: v6e
topology: v6e:2x2x1
jax: 0.10.0
libtpu: 0.0.40
codegen_flags: <defaults>
</compile_context>

<pallas_src>
import functools

import numpy as np
import jax
import jax.numpy as jnp
from jax.experimental import pallas as pl
from jax.experimental.pallas import tpu as pltpu


# ----------------------------------------------------------------------------
# Pallas kernel: builds the matching cost matrix C[Q, Tp] for Bb batch elements.
# ----------------------------------------------------------------------------
def _matcher_cost_kernel(logits_ref, onehot_ref, pbox_ref, tbox_ref,
                         ppts_ref, tpts_ref, out_ref,
                         *, bb, inv_p, alpha, gamma,
                         w_cls, w_mask, w_dice, w_box, w_giou):
    f32 = jnp.float32
    bf16 = jnp.bfloat16

    for i in range(bb):  # static unrolled loop over the batch block
        logits = logits_ref[i].astype(f32)   # [Q, C]
        onehot = onehot_ref[i]               # [C, Tp]  bf16 one-hot(labels)^T
        pbox = pbox_ref[i].astype(f32)       # [Q, 6]
        tbox = tbox_ref[i].astype(f32)       # [6, Tp]
        x = ppts_ref[i].astype(f32)          # [Q, P]   pred mask logits at sampled points
        t_bf = tpts_ref[i]                   # [P, Tp]  bf16 target mask values
        t = t_bf.astype(f32)

        Q = logits.shape[0]
        Tp = onehot.shape[1]

        # ---- classification focal-style cost (gather at labels == one-hot matmul) ----
        p = 1.0 / (1.0 + jnp.exp(-logits))   # exact sigmoid (small array, log(1-p) sensitive)
        if float(gamma) == 2.0:
            p_g = p * p
            q_g = (1.0 - p) * (1.0 - p)
        else:
            p_g = jnp.exp(gamma * jnp.log(jnp.maximum(p, 1e-30)))
            q_g = jnp.exp(gamma * jnp.log(jnp.maximum(1.0 - p, 1e-30)))
        neg_cost = (1.0 - alpha) * p_g * (-jnp.log(1.0 - p + 1e-8))
        pos_cost = alpha * q_g * (-jnp.log(p + 1e-8))
        cost_cls = jnp.dot((pos_cost - neg_cost).astype(bf16), onehot,
                           preferred_element_type=f32)               # [Q, Tp]

        # ---- mask costs: fused BCE + dice numerator via a single MXU matmul ----
        # s = sigmoid(x) via EUP exp + approx reciprocal (approx recip is ~free)
        s = pl.reciprocal(1.0 + jnp.exp(-x), approx=True)             # [Q, P]
        # BCE_with_logits(x, 0) = max(x,0) - log(sigmoid(|x|)); reuse s.
        neg_ce = jnp.maximum(x, 0.0) - jnp.log(jnp.where(x >= 0.0, s, 1.0 - s))
        # pos_ce@t + neg_ce@(1-t) == (-x)@t + rowsum(neg_ce)   (since pos_ce - neg_ce = -x)
        a_fused = jnp.concatenate([-x, s], axis=0).astype(bf16)       # [2Q, P]
        at = jnp.dot(a_fused, t_bf, preferred_element_type=f32)       # [2Q, Tp]
        xt = at[:Q]                                                   # (-x) @ t
        st = at[Q:]                                                   # s @ t

        cost_mask = (xt + jnp.sum(neg_ce, axis=1, keepdims=True)) * inv_p

        denom = jnp.sum(s, axis=1, keepdims=True) + jnp.sum(t, axis=0, keepdims=True)
        cost_dice = 1.0 - (2.0 * st + 1.0) * pl.reciprocal(denom + 1.0, approx=True)

        # ---- L1 box cost (torch.cdist, p=1), per-coordinate broadcast ----
        cost_bbox = jnp.zeros((Q, Tp), f32)
        for d in range(6):
            cost_bbox = cost_bbox + jnp.abs(pbox[:, d:d + 1] - tbox[d:d + 1, :])

        # ---- negative 3-D generalized IoU (cxcyczwhd -> xyzxyz), lo/hi hoisted ----
        p_lo = pbox[:, 0:3] - 0.5 * pbox[:, 3:6]   # [Q, 3]
        p_hi = pbox[:, 0:3] + 0.5 * pbox[:, 3:6]
        t_lo = tbox[0:3, :] - 0.5 * tbox[3:6, :]   # [3, Tp]
        t_hi = tbox[0:3, :] + 0.5 * tbox[3:6, :]

        inter = jnp.ones((Q, Tp), f32)
        enclose = jnp.ones((Q, Tp), f32)
        for d in range(3):
            hi_i = jnp.minimum(p_hi[:, d:d + 1], t_hi[d:d + 1, :])
            lo_i = jnp.maximum(p_lo[:, d:d + 1], t_lo[d:d + 1, :])
            inter = inter * jnp.maximum(hi_i - lo_i, 0.0)
            hi_e = jnp.maximum(p_hi[:, d:d + 1], t_hi[d:d + 1, :])
            lo_e = jnp.minimum(p_lo[:, d:d + 1], t_lo[d:d + 1, :])
            enclose = enclose * jnp.maximum(hi_e - lo_e, 0.0)

        p_vol = pbox[:, 3:4] * pbox[:, 4:5] * pbox[:, 5:6]    # [Q, 1]
        t_vol = tbox[3:4, :] * tbox[4:5, :] * tbox[5:6, :]    # [1, Tp]
        union = p_vol + t_vol - inter
        inv_union = pl.reciprocal(union + 1e-7, approx=True)
        inv_enclose = pl.reciprocal(enclose + 1e-7, approx=True)
        giou = inter * inv_union - (enclose - union) * inv_enclose
        cost_giou = -giou

        out_ref[i] = (w_mask * cost_mask + w_cls * cost_cls + w_dice * cost_dice
                      + w_box * cost_bbox + w_giou * cost_giou).astype(out_ref.dtype)


# ----------------------------------------------------------------------------
# Wrapper: glue (one-hot, transposes, lane padding, bf16 casts) + pallas_call.
# ----------------------------------------------------------------------------
def hungarian_cost_matrix(pred_logits, tgt_labels, pred_boxes, tgt_boxes,
                          pred_pts, tgt_pts, *, num_classes, alpha, gamma,
                          w_cls, w_mask, w_dice, w_box, w_giou):
    f32 = jnp.float32
    bf16 = jnp.bfloat16
    B, Q, C = pred_logits.shape
    T = tgt_labels.shape[1]
    P = pred_pts.shape[2]

    # Lane-dense target dimension: pad T to a multiple of 128 (dense stores, full MXU N).
    Tp = max(128, ((T + 127) // 128) * 128)

    # one-hot(labels)^T, zero-padded (padded targets get zero classification cost); bf16.
    onehot_ct = jnp.transpose(jax.nn.one_hot(tgt_labels, num_classes, dtype=f32),
                              (0, 2, 1))                                     # [B, C, T]
    onehot_ct = jnp.pad(onehot_ct, ((0, 0), (0, 0), (0, Tp - T))).astype(bf16)

    # target boxes^T, padded with unit boxes (keeps union/enclose > 0 in padded columns).
    pad_box = jnp.tile(jnp.array([0.5, 0.5, 0.5, 1.0, 1.0, 1.0], f32)[None, None, :],
                       (B, Tp - T, 1))
    tbox_pad = jnp.concatenate([tgt_boxes.astype(f32), pad_box], axis=1)     # [B, Tp, 6]
    tboxT = jnp.transpose(tbox_pad, (0, 2, 1))                               # [B, 6, Tp]

    # sampled target mask values^T, zero-padded, bf16 (halves DMA bytes / VMEM).
    tptsT = jnp.transpose(tgt_pts, (0, 2, 1))                                # [B, P, T]
    tptsT = jnp.pad(tptsT, ((0, 0), (0, 0), (0, Tp - T))).astype(bf16)

    ppts = pred_pts.astype(bf16)                                             # [B, Q, P]

    # Batch blocking: process Bb batch elements per grid step (amortize per-step overhead).
    Bb = 1
    for cand in range(min(B, 8), 0, -1):
        if B % cand == 0:
            Bb = cand
            break

    kernel = functools.partial(
        _matcher_cost_kernel, bb=Bb, inv_p=1.0 / float(P), alpha=alpha, gamma=gamma,
        w_cls=w_cls, w_mask=w_mask, w_dice=w_dice, w_box=w_box, w_giou=w_giou)

    out = pl.pallas_call(
        kernel,
        out_shape=jax.ShapeDtypeStruct((B, Q, Tp), f32),
        grid_spec=pltpu.PrefetchScalarGridSpec(
            num_scalar_prefetch=0,
            grid=(B // Bb,),
            in_specs=[
                pl.BlockSpec((Bb, Q, C), lambda b: (b, 0, 0)),
                pl.BlockSpec((Bb, C, Tp), lambda b: (b, 0, 0)),
                pl.BlockSpec((Bb, Q, 6), lambda b: (b, 0, 0)),
                pl.BlockSpec((Bb, 6, Tp), lambda b: (b, 0, 0)),
                pl.BlockSpec((Bb, Q, P), lambda b: (b, 0, 0)),
                pl.BlockSpec((Bb, P, Tp), lambda b: (b, 0, 0)),
            ],
            out_specs=pl.BlockSpec((Bb, Q, Tp), lambda b: (b, 0, 0)),
        ),
        compiler_params=pltpu.CompilerParams(
            dimension_semantics=("parallel",)),  # batch blocks are independent -> megacore
    )(pred_logits.astype(f32), onehot_ct, pred_boxes.astype(f32), tboxT, ppts, tptsT)

    return out[:, :, :T]


# ----------------------------------------------------------------------------
# Glue: trilinear point sampling (grid_sample-style, align_corners=False, zero pad).
# Gather-heavy -> kept in plain JAX, not in the Pallas kernel.
# ----------------------------------------------------------------------------
def point_sample_3d(vol, coords):
    # vol: [N, D, H, W]; coords: [P, 3] in [0, 1] with order (x=W, y=H, z=D).
    N, D, H, W = vol.shape
    x = coords[:, 0] * W - 0.5
    y = coords[:, 1] * H - 0.5
    z = coords[:, 2] * D - 0.5
    x0 = jnp.floor(x)
    y0 = jnp.floor(y)
    z0 = jnp.floor(z)
    wx1, wy1, wz1 = x - x0, y - y0, z - z0
    wx0, wy0, wz0 = 1.0 - wx1, 1.0 - wy1, 1.0 - wz1

    def gather(xi, yi, zi):
        valid = ((xi >= 0) & (xi < W) & (yi >= 0) & (yi < H) & (zi >= 0) & (zi < D))
        xi_c = jnp.clip(xi, 0, W - 1).astype(jnp.int32)
        yi_c = jnp.clip(yi, 0, H - 1).astype(jnp.int32)
        zi_c = jnp.clip(zi, 0, D - 1).astype(jnp.int32)
        v = vol[:, zi_c, yi_c, xi_c]                       # [N, P]
        return jnp.where(valid[None, :], v, 0.0)

    out = jnp.zeros((N, coords.shape[0]), jnp.float32)
    for dz, wz in ((0, wz0), (1, wz1)):
        for dy, wy in ((0, wy0), (1, wy1)):
            for dx, wx in ((0, wx0), (1, wx1)):
                out = out + gather(x0 + dx, y0 + dy, z0 + dz) * (wx * wy * wz)[None, :]
    return out


# ----------------------------------------------------------------------------
# Pure-JAX reference of the original cost-matrix math (for a correctness check).
# ----------------------------------------------------------------------------
def _reference_cost(logits, onehot, pbox, tboxT, x, t, *, alpha, gamma,
                    w_cls, w_mask, w_dice, w_box, w_giou):
    p = jax.nn.sigmoid(logits)
    neg_cost = (1 - alpha) * p ** gamma * (-jnp.log(1 - p + 1e-8))
    pos_cost = alpha * (1 - p) ** gamma * (-jnp.log(p + 1e-8))
    cost_cls = (pos_cost - neg_cost) @ onehot
    P = x.shape[1]
    pos_ce = jnp.logaddexp(0.0, -x)
    neg_ce = jnp.logaddexp(0.0, x)
    cost_mask = (pos_ce @ t + neg_ce @ (1 - t)) / P
    s = jax.nn.sigmoid(x)
    cost_dice = 1 - (2 * s @ t + 1) / (s.sum(1, keepdims=True) + t.sum(0, keepdims=True) + 1)
    cost_bbox = jnp.abs(pbox[:, None, :] - tboxT.T[None, :, :]).sum(-1)
    p_lo, p_hi = pbox[:, :3] - 0.5 * pbox[:, 3:], pbox[:, :3] + 0.5 * pbox[:, 3:]
    tb = tboxT.T
    t_lo, t_hi = tb[:, :3] - 0.5 * tb[:, 3:], tb[:, :3] + 0.5 * tb[:, 3:]
    inter = jnp.prod(jnp.maximum(jnp.minimum(p_hi[:, None], t_hi[None]) -
                                 jnp.maximum(p_lo[:, None], t_lo[None]), 0), -1)
    enc = jnp.prod(jnp.maximum(jnp.maximum(p_hi[:, None], t_hi[None]) -
                               jnp.minimum(p_lo[:, None], t_lo[None]), 0), -1)
    union = jnp.prod(pbox[:, 3:], -1)[:, None] + jnp.prod(tb[:, 3:], -1)[None, :] - inter
    giou = inter / union - (enc - union) / enc
    return (w_mask * cost_mask + w_cls * cost_cls + w_dice * cost_dice +
            w_box * cost_bbox + w_giou * (-giou))


if __name__ == "__main__":
    key = jax.random.PRNGKey(0)
    B, Q, NUM_CLASSES, T = 2, 16, 8, 8
    Dp = Hp = Wp = 8
    Dg = Hg = Wg = 16
    NUM_POINTS = 128

    # Matcher hyper-parameters (deterministic, in-script).
    alpha, gamma = 0.25, 2.0
    w_cls, w_mask, w_dice, w_box, w_giou = 2.0, 5.0, 5.0, 5.0, 2.0

    ks = jax.random.split(key, 8)
    pred_logits = jax.random.normal(ks[0], (B, Q, NUM_CLASSES), jnp.float32)
    pred_boxes = jnp.concatenate(
        [jax.random.uniform(ks[1], (B, Q, 3), minval=0.2, maxval=0.8),
         jax.random.uniform(ks[2], (B, Q, 3), minval=0.05, maxval=0.4)], axis=-1)
    pred_masks = jax.random.normal(ks[3], (B, Q, Dp, Hp, Wp), jnp.float32)

    tgt_labels = jax.random.randint(ks[4], (B, T), 0, NUM_CLASSES)
    tgt_boxes = jnp.concatenate(
        [jax.random.uniform(ks[5], (B, T, 3), minval=0.2, maxval=0.8),
         jax.random.uniform(ks[6], (B, T, 3), minval=0.05, maxval=0.4)], axis=-1)
    tgt_masks = (jax.random.uniform(ks[7], (B, T, Dg, Hg, Wg)) > 0.5).astype(jnp.float32)

    # Per-batch random sample points (torch.rand(1, num_points, 3) in the reference).
    point_coords = jax.random.uniform(jax.random.PRNGKey(1), (B, NUM_POINTS, 3))

    # Glue: point-sample masks (gather-heavy, plain JAX).
    ppts = jnp.stack([point_sample_3d(pred_masks[b], point_coords[b]) for b in range(B)])  # [B,Q,P]
    tpts = jnp.stack([point_sample_3d(tgt_masks[b], point_coords[b]) for b in range(B)])   # [B,T,P]

    C = hungarian_cost_matrix(
        pred_logits, tgt_labels, pred_boxes, tgt_boxes, ppts, tpts,
        num_classes=NUM_CLASSES, alpha=alpha, gamma=gamma,
        w_cls=w_cls, w_mask=w_mask, w_dice=w_dice, w_box=w_box, w_giou=w_giou)
    C = jax.block_until_ready(C)

    # Correctness check against a pure-JAX (f32, unfused) reference of the same math.
    onehot_ct_ref = jnp.transpose(jax.nn.one_hot(tgt_labels, NUM_CLASSES, dtype=jnp.float32),
                                  (0, 2, 1))                                              # [B,C,T]
    tboxT_ref = jnp.transpose(tgt_boxes, (0, 2, 1))                                       # [B,6,T]
    tptsT_ref = jnp.transpose(tpts, (0, 2, 1))                                            # [B,P,T]
    C_ref = jnp.stack([
        _reference_cost(pred_logits[b], onehot_ct_ref[b], pred_boxes[b], tboxT_ref[b],
                        ppts[b], tptsT_ref[b], alpha=alpha, gamma=gamma,
                        w_cls=w_cls, w_mask=w_mask, w_dice=w_dice,
                        w_box=w_box, w_giou=w_giou)
        for b in range(B)])
    assert np.allclose(np.asarray(C), np.asarray(C_ref), rtol=1e-2, atol=2e-2), \
        "Pallas cost matrix mismatch vs JAX reference"

    # TODO(synk): scipy.optimize.linear_sum_assignment (Hungarian algorithm) is a
    # sequential host-side algorithm with no clean Pallas/TPU equivalent; run it on
    # the host if scipy is available.
    try:
        from scipy.optimize import linear_sum_assignment
        _ = [linear_sum_assignment(np.asarray(C[b])) for b in range(B)]
    except Exception:
        pass

    print("KERNEL_OK")
</pallas_src>

<mosaic_0001>
module attributes {stable_mosaic.version = 11 : i64} {
  func.func @_matcher_cost_kernel(%arg0: i32, %arg1: memref<2x16x8xf32, #tpu.memory_space<vmem>>, %arg2: memref<2x8x128xbf16, #tpu.memory_space<vmem>>, %arg3: memref<2x16x6xf32, #tpu.memory_space<vmem>>, %arg4: memref<2x6x128xf32, #tpu.memory_space<vmem>>, %arg5: memref<2x16x128xbf16, #tpu.memory_space<vmem>>, %arg6: memref<2x128x128xbf16, #tpu.memory_space<vmem>>, %arg7: memref<2x16x128xf32, #tpu.memory_space<vmem>>) attributes {dimension_semantics = [#tpu.dimension_semantics<parallel>], iteration_bounds = array<i64: 1>, scalar_prefetch = 0 : i64, scratch_operands = 0 : i64, tpu.core_type = #tpu.core_type<tc>, window_params = [{transform_indices = @transform_0, window_bounds = array<i64: 2, 16, 8>}, {transform_indices = @transform_1, window_bounds = array<i64: 2, 8, 128>}, {transform_indices = @transform_2, window_bounds = array<i64: 2, 16, 6>}, {transform_indices = @transform_3, window_bounds = array<i64: 2, 6, 128>}, {transform_indices = @transform_4, window_bounds = array<i64: 2, 16, 128>}, {transform_indices = @transform_5, window_bounds = array<i64: 2, 128, 128>}, {transform_indices = @transform_6, window_bounds = array<i64: 2, 16, 128>}]} {
    %c0 = arith.constant 0 : index
    %c0_0 = arith.constant 0 : index
    %c0_1 = arith.constant 0 : index
    %0 = vector.load %arg1[%c0, %c0_0, %c0_1] : memref<2x16x8xf32, #tpu.memory_space<vmem>>, vector<1x16x8xf32>
    %1 = vector.shape_cast %0 : vector<1x16x8xf32> to vector<16x8xf32>
    %c0_2 = arith.constant 0 : index
    %c0_3 = arith.constant 0 : index
    %c0_4 = arith.constant 0 : index
    %2 = vector.load %arg2[%c0_2, %c0_3, %c0_4] : memref<2x8x128xbf16, #tpu.memory_space<vmem>>, vector<1x8x128xbf16>
    %3 = vector.shape_cast %2 : vector<1x8x128xbf16> to vector<8x128xbf16>
    %c0_5 = arith.constant 0 : index
    %c0_6 = arith.constant 0 : index
    %c0_7 = arith.constant 0 : index
    %4 = vector.load %arg3[%c0_5, %c0_6, %c0_7] : memref<2x16x6xf32, #tpu.memory_space<vmem>>, vector<1x16x6xf32>
    %5 = vector.shape_cast %4 : vector<1x16x6xf32> to vector<16x6xf32>
    %c0_8 = arith.constant 0 : index
    %c0_9 = arith.constant 0 : index
    %c0_10 = arith.constant 0 : index
    %6 = vector.load %arg4[%c0_8, %c0_9, %c0_10] : memref<2x6x128xf32, #tpu.memory_space<vmem>>, vector<1x6x128xf32>
    %7 = vector.shape_cast %6 : vector<1x6x128xf32> to vector<6x128xf32>
    %c0_11 = arith.constant 0 : index
    %c0_12 = arith.constant 0 : index
    %c0_13 = arith.constant 0 : index
    %8 = vector.load %arg5[%c0_11, %c0_12, %c0_13] : memref<2x16x128xbf16, #tpu.memory_space<vmem>>, vector<1x16x128xbf16>
    %9 = vector.shape_cast %8 : vector<1x16x128xbf16> to vector<16x128xbf16>
    %10 = arith.extf %9 : vector<16x128xbf16> to vector<16x128xf32>
    %c0_14 = arith.constant 0 : index
    %c0_15 = arith.constant 0 : index
    %c0_16 = arith.constant 0 : index
    %11 = vector.load %arg6[%c0_14, %c0_15, %c0_16] : memref<2x128x128xbf16, #tpu.memory_space<vmem>>, vector<1x128x128xbf16>
    %12 = vector.shape_cast %11 : vector<1x128x128xbf16> to vector<128x128xbf16>
    %13 = arith.extf %12 : vector<128x128xbf16> to vector<128x128xf32>
    %cst = arith.constant 0.000000e+00 : f32
    %14 = vector.broadcast %cst : f32 to vector<16x8xf32>
    %15 = arith.subf %14, %1 : vector<16x8xf32>
    %16 = math.exp %15 : vector<16x8xf32>
    %cst_17 = arith.constant 1.000000e+00 : f32
    %17 = vector.broadcast %cst_17 : f32 to vector<16x8xf32>
    %18 = arith.addf %17, %16 : vector<16x8xf32>
    %cst_18 = arith.constant 1.000000e+00 : f32
    %19 = vector.broadcast %cst_18 : f32 to vector<16x8xf32>
    %20 = arith.divf %19, %18 : vector<16x8xf32>
    %21 = arith.mulf %20, %20 : vector<16x8xf32>
    %cst_19 = arith.constant 1.000000e+00 : f32
    %22 = vector.broadcast %cst_19 : f32 to vector<16x8xf32>
    %23 = arith.subf %22, %20 : vector<16x8xf32>
    %cst_20 = arith.constant 1.000000e+00 : f32
    %24 = vector.broadcast %cst_20 : f32 to vector<16x8xf32>
    %25 = arith.subf %24, %20 : vector<16x8xf32>
    %26 = arith.mulf %23, %25 : vector<16x8xf32>
    %cst_21 = arith.constant 7.500000e-01 : f32
    %27 = vector.broadcast %cst_21 : f32 to vector<16x8xf32>
    %28 = arith.mulf %27, %21 : vector<16x8xf32>
    %cst_22 = arith.constant 1.000000e+00 : f32
    %29 = vector.broadcast %cst_22 : f32 to vector<16x8xf32>
    %30 = arith.subf %29, %20 : vector<16x8xf32>
    %cst_23 = arith.constant 9.99999993E-9 : f32
    %31 = vector.broadcast %cst_23 : f32 to vector<16x8xf32>
    %32 = arith.addf %30, %31 : vector<16x8xf32>
    %33 = math.log %32 : vector<16x8xf32>
    %cst_24 = arith.constant 0.000000e+00 : f32
    %34 = vector.broadcast %cst_24 : f32 to vector<16x8xf32>
    %35 = arith.subf %34, %33 : vector<16x8xf32>
    %36 = arith.mulf %28, %35 : vector<16x8xf32>
    %cst_25 = arith.constant 2.500000e-01 : f32
    %37 = vector.broadcast %cst_25 : f32 to vector<16x8xf32>
    %38 = arith.mulf %37, %26 : vector<16x8xf32>
    %cst_26 = arith.constant 9.99999993E-9 : f32
    %39 = vector.broadcast %cst_26 : f32 to vector<16x8xf32>
    %40 = arith.addf %20, %39 : vector<16x8xf32>
    %41 = math.log %40 : vector<16x8xf32>
    %cst_27 = arith.constant 0.000000e+00 : f32
    %42 = vector.broadcast %cst_27 : f32 to vector<16x8xf32>
    %43 = arith.subf %42, %41 : vector<16x8xf32>
    %44 = arith.mulf %38, %43 : vector<16x8xf32>
    %45 = arith.subf %44, %36 : vector<16x8xf32>
    %46 = arith.truncf %45 : vector<16x8xf32> to vector<16x8xbf16>
    %cst_28 = arith.constant dense<0.000000e+00> : vector<16x128xf32>
    %47 = tpu.matmul %46, %3, %cst_28 {dimension_numbers = #tpu.dot_dimension_numbers<[1], [0], [0], [1], [0, 0, 1, 1], [], []>} : vector<16x8xbf16>, vector<8x128xbf16>, vector<16x128xf32> -> vector<16x128xf32>
    %cst_29 = arith.constant 0.000000e+00 : f32
    %48 = vector.broadcast %cst_29 : f32 to vector<16x128xf32>
    %49 = arith.subf %48, %10 : vector<16x128xf32>
    %50 = math.exp %49 : vector<16x128xf32>
    %cst_30 = arith.constant 1.000000e+00 : f32
    %51 = vector.broadcast %cst_30 : f32 to vector<16x128xf32>
    %52 = arith.addf %51, %50 : vector<16x128xf32>
    %53 = tpu.reciprocal %52 {approx = true} : vector<16x128xf32> -> vector<16x128xf32>
    %cst_31 = arith.constant 0.000000e+00 : f32
    %54 = vector.broadcast %cst_31 : f32 to vector<16x128xf32>
    %55 = arith.maximumf %10, %54 : vector<16x128xf32>
    %cst_32 = arith.constant 0.000000e+00 : f32
    %56 = vector.broadcast %cst_32 : f32 to vector<16x128xf32>
    %57 = arith.cmpf oge, %10, %56 : vector<16x128xf32>
    %cst_33 = arith.constant 1.000000e+00 : f32
    %58 = vector.broadcast %cst_33 : f32 to vector<16x128xf32>
    %59 = arith.subf %58, %53 : vector<16x128xf32>
    %60 = arith.select %57, %53, %59 : vector<16x128xi1>, vector<16x128xf32>
    %61 = math.log %60 : vector<16x128xf32>
    %62 = arith.subf %55, %61 : vector<16x128xf32>
    %cst_34 = arith.constant 0.000000e+00 : f32
    %63 = vector.broadcast %cst_34 : f32 to vector<16x128xf32>
    %64 = arith.subf %63, %10 : vector<16x128xf32>
    %65 = tpu.concatenate %64, %53 in 0 : vector<16x128xf32>, vector<16x128xf32> -> vector<32x128xf32>
    %66 = arith.truncf %65 : vector<32x128xf32> to vector<32x128xbf16>
    %cst_35 = arith.constant dense<0.000000e+00> : vector<32x128xf32>
    %67 = tpu.matmul %66, %12, %cst_35 {dimension_numbers = #tpu.dot_dimension_numbers<[1], [0], [0], [1], [0, 0, 1, 1], [], []>} : vector<32x128xbf16>, vector<128x128xbf16>, vector<32x128xf32> -> vector<32x128xf32>
    %68 = vector.extract_strided_slice %67 {offsets = [0, 0], sizes = [16, 128], strides = [1, 1]} : vector<32x128xf32> to vector<16x128xf32>
    %69 = vector.extract_strided_slice %67 {offsets = [16, 0], sizes = [16, 128], strides = [1, 1]} : vector<32x128xf32> to vector<16x128xf32>
    %cst_36 = arith.constant dense<0.000000e+00> : vector<16xf32>
    %70 = vector.multi_reduction <add>, %62, %cst_36 [1] : vector<16x128xf32> to vector<16xf32>
    %71 = vector.shape_cast %70 : vector<16xf32> to vector<16x1xf32>
    %72 = vector.broadcast %71 : vector<16x1xf32> to vector<16x128xf32>
    %73 = arith.addf %68, %72 : vector<16x128xf32>
    %cst_37 = arith.constant 7.812500e-03 : f32
    %74 = vector.broadcast %cst_37 : f32 to vector<16x128xf32>
    %75 = arith.mulf %73, %74 : vector<16x128xf32>
    %cst_38 = arith.constant dense<0.000000e+00> : vector<16xf32>
    %76 = vector.multi_reduction <add>, %53, %cst_38 [1] : vector<16x128xf32> to vector<16xf32>
    %77 = vector.shape_cast %76 : vector<16xf32> to vector<16x1xf32>
    %cst_39 = arith.constant dense<0.000000e+00> : vector<128xf32>
    %78 = vector.multi_reduction <add>, %13, %cst_39 [0] : vector<128x128xf32> to vector<128xf32>
    %79 = vector.shape_cast %78 : vector<128xf32> to vector<1x128xf32>
    %80 = vector.broadcast %77 : vector<16x1xf32> to vector<16x128xf32>
    %81 = vector.broadcast %79 : vector<1x128xf32> to vector<16x128xf32>
    %82 = arith.addf %80, %81 : vector<16x128xf32>
    %cst_40 = arith.constant 2.000000e+00 : f32
    %83 = vector.broadcast %cst_40 : f32 to vector<16x128xf32>
    %84 = arith.mulf %83, %69 : vector<16x128xf32>
    %cst_41 = arith.constant 1.000000e+00 : f32
    %85 = vector.broadcast %cst_41 : f32 to vector<16x128xf32>
    %86 = arith.addf %84, %85 : vector<16x128xf32>
    %cst_42 = arith.constant 1.000000e+00 : f32
    %87 = vector.broadcast %cst_42 : f32 to vector<16x128xf32>
    %88 = arith.addf %82, %87 : vector<16x128xf32>
    %89 = tpu.reciprocal %88 {approx = true} : vector<16x128xf32> -> vector<16x128xf32>
    %90 = arith.mulf %86, %89 : vector<16x128xf32>
    %cst_43 = arith.constant 1.000000e+00 : f32
    %91 = vector.broadcast %cst_43 : f32 to vector<16x128xf32>
    %92 = arith.subf %91, %90 : vector<16x128xf32>
    %cst_44 = arith.constant 0.000000e+00 : f32
    %93 = vector.broadcast %cst_44 : f32 to vector<16x128xf32>
    %94 = vector.extract_strided_slice %5 {offsets = [0, 0], sizes = [16, 1], strides = [1, 1]} : vector<16x6xf32> to vector<16x1xf32>
    %95 = vector.extract_strided_slice %7 {offsets = [0, 0], sizes = [1, 128], strides = [1, 1]} : vector<6x128xf32> to vector<1x128xf32>
    %96 = vector.broadcast %94 : vector<16x1xf32> to vector<16x128xf32>
    %97 = vector.broadcast %95 : vector<1x128xf32> to vector<16x128xf32>
    %98 = arith.subf %96, %97 : vector<16x128xf32>
    %99 = math.absf %98 : vector<16x128xf32>
    %100 = arith.addf %93, %99 : vector<16x128xf32>
    %101 = vector.extract_strided_slice %5 {offsets = [0, 1], sizes = [16, 1], strides = [1, 1]} : vector<16x6xf32> to vector<16x1xf32>
    %102 = vector.extract_strided_slice %7 {offsets = [1, 0], sizes = [1, 128], strides = [1, 1]} : vector<6x128xf32> to vector<1x128xf32>
    %103 = vector.broadcast %101 : vector<16x1xf32> to vector<16x128xf32>
    %104 = vector.broadcast %102 : vector<1x128xf32> to vector<16x128xf32>
    %105 = arith.subf %103, %104 : vector<16x128xf32>
    %106 = math.absf %105 : vector<16x128xf32>
    %107 = arith.addf %100, %106 : vector<16x128xf32>
    %108 = vector.extract_strided_slice %5 {offsets = [0, 2], sizes = [16, 1], strides = [1, 1]} : vector<16x6xf32> to vector<16x1xf32>
    %109 = vector.extract_strided_slice %7 {offsets = [2, 0], sizes = [1, 128], strides = [1, 1]} : vector<6x128xf32> to vector<1x128xf32>
    %110 = vector.broadcast %108 : vector<16x1xf32> to vector<16x128xf32>
    %111 = vector.broadcast %109 : vector<1x128xf32> to vector<16x128xf32>
    %112 = arith.subf %110, %111 : vector<16x128xf32>
    %113 = math.absf %112 : vector<16x128xf32>
    %114 = arith.addf %107, %113 : vector<16x128xf32>
    %115 = vector.extract_strided_slice %5 {offsets = [0, 3], sizes = [16, 1], strides = [1, 1]} : vector<16x6xf32> to vector<16x1xf32>
    %116 = vector.extract_strided_slice %7 {offsets = [3, 0], sizes = [1, 128], strides = [1, 1]} : vector<6x128xf32> to vector<1x128xf32>
    %117 = vector.broadcast %115 : vector<16x1xf32> to vector<16x128xf32>
    %118 = vector.broadcast %116 : vector<1x128xf32> to vector<16x128xf32>
    %119 = arith.subf %117, %118 : vector<16x128xf32>
    %120 = math.absf %119 : vector<16x128xf32>
    %121 = arith.addf %114, %120 : vector<16x128xf32>
    %122 = vector.extract_strided_slice %5 {offsets = [0, 4], sizes = [16, 1], strides = [1, 1]} : vector<16x6xf32> to vector<16x1xf32>
    %123 = vector.extract_strided_slice %7 {offsets = [4, 0], sizes = [1, 128], strides = [1, 1]} : vector<6x128xf32> to vector<1x128xf32>
    %124 = vector.broadcast %122 : vector<16x1xf32> to vector<16x128xf32>
    %125 = vector.broadcast %123 : vector<1x128xf32> to vector<16x128xf32>
    %126 = arith.subf %124, %125 : vector<16x128xf32>
    %127 = math.absf %126 : vector<16x128xf32>
    %128 = arith.addf %121, %127 : vector<16x128xf32>
    %129 = vector.extract_strided_slice %5 {offsets = [0, 5], sizes = [16, 1], strides = [1, 1]} : vector<16x6xf32> to vector<16x1xf32>
    %130 = vector.extract_strided_slice %7 {offsets = [5, 0], sizes = [1, 128], strides = [1, 1]} : vector<6x128xf32> to vector<1x128xf32>
    %131 = vector.broadcast %129 : vector<16x1xf32> to vector<16x128xf32>
    %132 = vector.broadcast %130 : vector<1x128xf32> to vector<16x128xf32>
    %133 = arith.subf %131, %132 : vector<16x128xf32>
    %134 = math.absf %133 : vector<16x128xf32>
    %135 = arith.addf %128, %134 : vector<16x128xf32>
    %136 = vector.extract_strided_slice %5 {offsets = [0, 0], sizes = [16, 3], strides = [1, 1]} : vector<16x6xf32> to vector<16x3xf32>
    %137 = vector.extract_strided_slice %5 {offsets = [0, 3], sizes = [16, 3], strides = [1, 1]} : vector<16x6xf32> to vector<16x3xf32>
    %cst_45 = arith.constant 5.000000e-01 : f32
    %138 = vector.broadcast %cst_45 : f32 to vector<16x3xf32>
    %139 = arith.mulf %138, %137 : vector<16x3xf32>
    %140 = arith.subf %136, %139 : vector<16x3xf32>
    %141 = vector.extract_strided_slice %5 {offsets = [0, 0], sizes = [16, 3], strides = [1, 1]} : vector<16x6xf32> to vector<16x3xf32>
    %142 = vector.extract_strided_slice %5 {offsets = [0, 3], sizes = [16, 3], strides = [1, 1]} : vector<16x6xf32> to vector<16x3xf32>
    %cst_46 = arith.constant 5.000000e-01 : f32
    %143 = vector.broadcast %cst_46 : f32 to vector<16x3xf32>
    %144 = arith.mulf %143, %142 : vector<16x3xf32>
    %145 = arith.addf %141, %144 : vector<16x3xf32>
    %146 = vector.extract_strided_slice %7 {offsets = [0, 0], sizes = [3, 128], strides = [1, 1]} : vector<6x128xf32> to vector<3x128xf32>
    %147 = vector.extract_strided_slice %7 {offsets = [3, 0], sizes = [3, 128], strides = [1, 1]} : vector<6x128xf32> to vector<3x128xf32>
    %cst_47 = arith.constant 5.000000e-01 : f32
    %148 = vector.broadcast %cst_47 : f32 to vector<3x128xf32>
    %149 = arith.mulf %148, %147 : vector<3x128xf32>
    %150 = arith.subf %146, %149 : vector<3x128xf32>
    %151 = vector.extract_strided_slice %7 {offsets = [0, 0], sizes = [3, 128], strides = [1, 1]} : vector<6x128xf32> to vector<3x128xf32>
    %152 = vector.extract_strided_slice %7 {offsets = [3, 0], sizes = [3, 128], strides = [1, 1]} : vector<6x128xf32> to vector<3x128xf32>
    %cst_48 = arith.constant 5.000000e-01 : f32
    %153 = vector.broadcast %cst_48 : f32 to vector<3x128xf32>
    %154 = arith.mulf %153, %152 : vector<3x128xf32>
    %155 = arith.addf %151, %154 : vector<3x128xf32>
    %cst_49 = arith.constant 1.000000e+00 : f32
    %156 = vector.broadcast %cst_49 : f32 to vector<16x128xf32>
    %cst_50 = arith.constant 1.000000e+00 : f32
    %157 = vector.broadcast %cst_50 : f32 to vector<16x128xf32>
    %158 = vector.extract_strided_slice %145 {offsets = [0, 0], sizes = [16, 1], strides = [1, 1]} : vector<16x3xf32> to vector<16x1xf32>
    %159 = vector.extract_strided_slice %155 {offsets = [0, 0], sizes = [1, 128], strides = [1, 1]} : vector<3x128xf32> to vector<1x128xf32>
    %160 = vector.broadcast %158 : vector<16x1xf32> to vector<16x128xf32>
    %161 = vector.broadcast %159 : vector<1x128xf32> to vector<16x128xf32>
    %162 = arith.minimumf %160, %161 : vector<16x128xf32>
    %163 = vector.extract_strided_slice %140 {offsets = [0, 0], sizes = [16, 1], strides = [1, 1]} : vector<16x3xf32> to vector<16x1xf32>
    %164 = vector.extract_strided_slice %150 {offsets = [0, 0], sizes = [1, 128], strides = [1, 1]} : vector<3x128xf32> to vector<1x128xf32>
    %165 = vector.broadcast %163 : vector<16x1xf32> to vector<16x128xf32>
    %166 = vector.broadcast %164 : vector<1x128xf32> to vector<16x128xf32>
    %167 = arith.maximumf %165, %166 : vector<16x128xf32>
    %168 = arith.subf %162, %167 : vector<16x128xf32>
    %cst_51 = arith.constant 0.000000e+00 : f32
    %169 = vector.broadcast %cst_51 : f32 to vector<16x128xf32>
    %170 = arith.maximumf %168, %169 : vector<16x128xf32>
    %171 = arith.mulf %156, %170 : vector<16x128xf32>
    %172 = vector.extract_strided_slice %145 {offsets = [0, 0], sizes = [16, 1], strides = [1, 1]} : vector<16x3xf32> to vector<16x1xf32>
    %173 = vector.extract_strided_slice %155 {offsets = [0, 0], sizes = [1, 128], strides = [1, 1]} : vector<3x128xf32> to vector<1x128xf32>
    %174 = vector.broadcast %172 : vector<16x1xf32> to vector<16x128xf32>
    %175 = vector.broadcast %173 : vector<1x128xf32> to vector<16x128xf32>
    %176 = arith.maximumf %174, %175 : vector<16x128xf32>
    %177 = vector.extract_strided_slice %140 {offsets = [0, 0], sizes = [16, 1], strides = [1, 1]} : vector<16x3xf32> to vector<16x1xf32>
    %178 = vector.extract_strided_slice %150 {offsets = [0, 0], sizes = [1, 128], strides = [1, 1]} : vector<3x128xf32> to vector<1x128xf32>
    %179 = vector.broadcast %177 : vector<16x1xf32> to vector<16x128xf32>
    %180 = vector.broadcast %178 : vector<1x128xf32> to vector<16x128xf32>
    %181 = arith.minimumf %179, %180 : vector<16x128xf32>
    %182 = arith.subf %176, %181 : vector<16x128xf32>
    %cst_52 = arith.constant 0.000000e+00 : f32
    %183 = vector.broadcast %cst_52 : f32 to vector<16x128xf32>
    %184 = arith.maximumf %182, %183 : vector<16x128xf32>
    %185 = arith.mulf %157, %184 : vector<16x128xf32>
    %186 = vector.extract_strided_slice %145 {offsets = [0, 1], sizes = [16, 1], strides = [1, 1]} : vector<16x3xf32> to vector<16x1xf32>
    %187 = vector.extract_strided_slice %155 {offsets = [1, 0], sizes = [1, 128], strides = [1, 1]} : vector<3x128xf32> to vector<1x128xf32>
    %188 = vector.broadcast %186 : vector<16x1xf32> to vector<16x128xf32>
    %189 = vector.broadcast %187 : vector<1x128xf32> to vector<16x128xf32>
    %190 = arith.minimumf %188, %189 : vector<16x128xf32>
    %191 = vector.extract_strided_slice %140 {offsets = [0, 1], sizes = [16, 1], strides = [1, 1]} : vector<16x3xf32> to vector<16x1xf32>
    %192 = vector.extract_strided_slice %150 {offsets = [1, 0], sizes = [1, 128], strides = [1, 1]} : vector<3x128xf32> to vector<1x128xf32>
    %193 = vector.broadcast %191 : vector<16x1xf32> to vector<16x128xf32>
    %194 = vector.broadcast %192 : vector<1x128xf32> to vector<16x128xf32>
    %195 = arith.maximumf %193, %194 : vector<16x128xf32>
    %196 = arith.subf %190, %195 : vector<16x128xf32>
    %cst_53 = arith.constant 0.000000e+00 : f32
    %197 = vector.broadcast %cst_53 : f32 to vector<16x128xf32>
    %198 = arith.maximumf %196, %197 : vector<16x128xf32>
    %199 = arith.mulf %171, %198 : vector<16x128xf32>
    %200 = vector.extract_strided_slice %145 {offsets = [0, 1], sizes = [16, 1], strides = [1, 1]} : vector<16x3xf32> to vector<16x1xf32>
    %201 = vector.extract_strided_slice %155 {offsets = [1, 0], sizes = [1, 128], strides = [1, 1]} : vector<3x128xf32> to vector<1x128xf32>
    %202 = vector.broadcast %200 : vector<16x1xf32> to vector<16x128xf32>
    %203 = vector.broadcast %201 : vector<1x128xf32> to vector<16x128xf32>
    %204 = arith.maximumf %202, %203 : vector<16x128xf32>
    %205 = vector.extract_strided_slice %140 {offsets = [0, 1], sizes = [16, 1], strides = [1, 1]} : vector<16x3xf32> to vector<16x1xf32>
    %206 = vector.extract_strided_slice %150 {offsets = [1, 0], sizes = [1, 128], strides = [1, 1]} : vector<3x128xf32> to vector<1x128xf32>
    %207 = vector.broadcast %205 : vector<16x1xf32> to vector<16x128xf32>
    %208 = vector.broadcast %206 : vector<1x128xf32> to vector<16x128xf32>
    %209 = arith.minimumf %207, %208 : vector<16x128xf32>
    %210 = arith.subf %204, %209 : vector<16x128xf32>
    %cst_54 = arith.constant 0.000000e+00 : f32
    %211 = vector.broadcast %cst_54 : f32 to vector<16x128xf32>
    %212 = arith.maximumf %210, %211 : vector<16x128xf32>
    %213 = arith.mulf %185, %212 : vector<16x128xf32>
    %214 = vector.extract_strided_slice %145 {offsets = [0, 2], sizes = [16, 1], strides = [1, 1]} : vector<16x3xf32> to vector<16x1xf32>
    %215 = vector.extract_strided_slice %155 {offsets = [2, 0], sizes = [1, 128], strides = [1, 1]} : vector<3x128xf32> to vector<1x128xf32>
    %216 = vector.broadcast %214 : vector<16x1xf32> to vector<16x128xf32>
    %217 = vector.broadcast %215 : vector<1x128xf32> to vector<16x128xf32>
    %218 = arith.minimumf %216, %217 : vector<16x128xf32>
    %219 = vector.extract_strided_slice %140 {offsets = [0, 2], sizes = [16, 1], strides = [1, 1]} : vector<16x3xf32> to vector<16x1xf32>
    %220 = vector.extract_strided_slice %150 {offsets = [2, 0], sizes = [1, 128], strides = [1, 1]} : vector<3x128xf32> to vector<1x128xf32>
    %221 = vector.broadcast %219 : vector<16x1xf32> to vector<16x128xf32>
    %222 = vector.broadcast %220 : vector<1x128xf32> to vector<16x128xf32>
    %223 = arith.maximumf %221, %222 : vector<16x128xf32>
    %224 = arith.subf %218, %223 : vector<16x128xf32>
    %cst_55 = arith.constant 0.000000e+00 : f32
    %225 = vector.broadcast %cst_55 : f32 to vector<16x128xf32>
    %226 = arith.maximumf %224, %225 : vector<16x128xf32>
    %227 = arith.mulf %199, %226 : vector<16x128xf32>
    %228 = vector.extract_strided_slice %145 {offsets = [0, 2], sizes = [16, 1], strides = [1, 1]} : vector<16x3xf32> to vector<16x1xf32>
    %229 = vector.extract_strided_slice %155 {offsets = [2, 0], sizes = [1, 128], strides = [1, 1]} : vector<3x128xf32> to vector<1x128xf32>
    %230 = vector.broadcast %228 : vector<16x1xf32> to vector<16x128xf32>
    %231 = vector.broadcast %229 : vector<1x128xf32> to vector<16x128xf32>
    %232 = arith.maximumf %230, %231 : vector<16x128xf32>
    %233 = vector.extract_strided_slice %140 {offsets = [0, 2], sizes = [16, 1], strides = [1, 1]} : vector<16x3xf32> to vector<16x1xf32>
    %234 = vector.extract_strided_slice %150 {offsets = [2, 0], sizes = [1, 128], strides = [1, 1]} : vector<3x128xf32> to vector<1x128xf32>
    %235 = vector.broadcast %233 : vector<16x1xf32> to vector<16x128xf32>
    %236 = vector.broadcast %234 : vector<1x128xf32> to vector<16x128xf32>
    %237 = arith.minimumf %235, %236 : vector<16x128xf32>
    %238 = arith.subf %232, %237 : vector<16x128xf32>
    %cst_56 = arith.constant 0.000000e+00 : f32
    %239 = vector.broadcast %cst_56 : f32 to vector<16x128xf32>
    %240 = arith.maximumf %238, %239 : vector<16x128xf32>
    %241 = arith.mulf %213, %240 : vector<16x128xf32>
    %242 = vector.extract_strided_slice %5 {offsets = [0, 3], sizes = [16, 1], strides = [1, 1]} : vector<16x6xf32> to vector<16x1xf32>
    %243 = vector.extract_strided_slice %5 {offsets = [0, 4], sizes = [16, 1], strides = [1, 1]} : vector<16x6xf32> to vector<16x1xf32>
    %244 = arith.mulf %242, %243 : vector<16x1xf32>
    %245 = vector.extract_strided_slice %5 {offsets = [0, 5], sizes = [16, 1], strides = [1, 1]} : vector<16x6xf32> to vector<16x1xf32>
    %246 = arith.mulf %244, %245 : vector<16x1xf32>
    %247 = vector.extract_strided_slice %7 {offsets = [3, 0], sizes = [1, 128], strides = [1, 1]} : vector<6x128xf32> to vector<1x128xf32>
    %248 = vector.extract_strided_slice %7 {offsets = [4, 0], sizes = [1, 128], strides = [1, 1]} : vector<6x128xf32> to vector<1x128xf32>
    %249 = arith.mulf %247, %248 : vector<1x128xf32>
    %250 = vector.extract_strided_slice %7 {offsets = [5, 0], sizes = [1, 128], strides = [1, 1]} : vector<6x128xf32> to vector<1x128xf32>
    %251 = arith.mulf %249, %250 : vector<1x128xf32>
    %252 = vector.broadcast %246 : vector<16x1xf32> to vector<16x128xf32>
    %253 = vector.broadcast %251 : vector<1x128xf32> to vector<16x128xf32>
    %254 = arith.addf %252, %253 : vector<16x128xf32>
    %255 = arith.subf %254, %227 : vector<16x128xf32>
    %cst_57 = arith.constant 1.000000e-07 : f32
    %256 = vector.broadcast %cst_57 : f32 to vector<16x128xf32>
    %257 = arith.addf %255, %256 : vector<16x128xf32>
    %258 = tpu.reciprocal %257 {approx = true} : vector<16x128xf32> -> vector<16x128xf32>
    %cst_58 = arith.constant 1.000000e-07 : f32
    %259 = vector.broadcast %cst_58 : f32 to vector<16x128xf32>
    %260 = arith.addf %241, %259 : vector<16x128xf32>
    %261 = tpu.reciprocal %260 {approx = true} : vector<16x128xf32> -> vector<16x128xf32>
    %262 = arith.mulf %227, %258 : vector<16x128xf32>
    %263 = arith.subf %241, %255 : vector<16x128xf32>
    %264 = arith.mulf %263, %261 : vector<16x128xf32>
    %265 = arith.subf %262, %264 : vector<16x128xf32>
    %cst_59 = arith.constant 0.000000e+00 : f32
    %266 = vector.broadcast %cst_59 : f32 to vector<16x128xf32>
    %267 = arith.subf %266, %265 : vector<16x128xf32>
    %cst_60 = arith.constant 5.000000e+00 : f32
    %268 = vector.broadcast %cst_60 : f32 to vector<16x128xf32>
    %269 = arith.mulf %268, %75 : vector<16x128xf32>
    %cst_61 = arith.constant 2.000000e+00 : f32
    %270 = vector.broadcast %cst_61 : f32 to vector<16x128xf32>
    %271 = arith.mulf %270, %47 : vector<16x128xf32>
    %272 = arith.addf %269, %271 : vector<16x128xf32>
    %cst_62 = arith.constant 5.000000e+00 : f32
    %273 = vector.broadcast %cst_62 : f32 to vector<16x128xf32>
    %274 = arith.mulf %273, %92 : vector<16x128xf32>
    %275 = arith.addf %272, %274 : vector<16x128xf32>
    %cst_63 = arith.constant 5.000000e+00 : f32
    %276 = vector.broadcast %cst_63 : f32 to vector<16x128xf32>
    %277 = arith.mulf %276, %135 : vector<16x128xf32>
    %278 = arith.addf %275, %277 : vector<16x128xf32>
    %cst_64 = arith.constant 2.000000e+00 : f32
    %279 = vector.broadcast %cst_64 : f32 to vector<16x128xf32>
    %280 = arith.mulf %279, %267 : vector<16x128xf32>
    %281 = arith.addf %278, %280 : vector<16x128xf32>
    %c0_65 = arith.constant 0 : index
    %c0_66 = arith.constant 0 : index
    %c0_67 = arith.constant 0 : index
    %282 = vector.load %arg7[%c0_65, %c0_66, %c0_67] : memref<2x16x128xf32, #tpu.memory_space<vmem>>, vector<1x16x128xf32>
    %283 = vector.shape_cast %282 : vector<1x16x128xf32> to vector<16x128xf32>
    %284 = vector.shape_cast %281 : vector<16x128xf32> to vector<1x16x128xf32>
    tpu.vector_store %arg7[%c0_65, %c0_66, %c0_67], %284 {strides = array<i32>} : memref<2x16x128xf32, #tpu.memory_space<vmem>>, vector<1x16x128xf32>,
    %c1 = arith.constant 1 : index
    %c0_68 = arith.constant 0 : index
    %c0_69 = arith.constant 0 : index
    %285 = vector.load %arg1[%c1, %c0_68, %c0_69] : memref<2x16x8xf32, #tpu.memory_space<vmem>>, vector<1x16x8xf32>
    %286 = vector.shape_cast %285 : vector<1x16x8xf32> to vector<16x8xf32>
    %c1_70 = arith.constant 1 : index
    %c0_71 = arith.constant 0 : index
    %c0_72 = arith.constant 0 : index
    %287 = vector.load %arg2[%c1_70, %c0_71, %c0_72] : memref<2x8x128xbf16, #tpu.memory_space<vmem>>, vector<1x8x128xbf16>
    %288 = vector.shape_cast %287 : vector<1x8x128xbf16> to vector<8x128xbf16>
    %c1_73 = arith.constant 1 : index
    %c0_74 = arith.constant 0 : index
    %c0_75 = arith.constant 0 : index
    %289 = vector.load %arg3[%c1_73, %c0_74, %c0_75] : memref<2x16x6xf32, #tpu.memory_space<vmem>>, vector<1x16x6xf32>
    %290 = vector.shape_cast %289 : vector<1x16x6xf32> to vector<16x6xf32>
    %c1_76 = arith.constant 1 : index
    %c0_77 = arith.constant 0 : index
    %c0_78 = arith.constant 0 : index
    %291 = vector.load %arg4[%c1_76, %c0_77, %c0_78] : memref<2x6x128xf32, #tpu.memory_space<vmem>>, vector<1x6x128xf32>
    %292 = vector.shape_cast %291 : vector<1x6x128xf32> to vector<6x128xf32>
    %c1_79 = arith.constant 1 : index
    %c0_80 = arith.constant 0 : index
    %c0_81 = arith.constant 0 : index
    %293 = vector.load %arg5[%c1_79, %c0_80, %c0_81] : memref<2x16x128xbf16, #tpu.memory_space<vmem>>, vector<1x16x128xbf16>
    %294 = vector.shape_cast %293 : vector<1x16x128xbf16> to vector<16x128xbf16>
    %295 = arith.extf %294 : vector<16x128xbf16> to vector<16x128xf32>
    %c1_82 = arith.constant 1 : index
    %c0_83 = arith.constant 0 : index
    %c0_84 = arith.constant 0 : index
    %296 = vector.load %arg6[%c1_82, %c0_83, %c0_84] : memref<2x128x128xbf16, #tpu.memory_space<vmem>>, vector<1x128x128xbf16>
    %297 = vector.shape_cast %296 : vector<1x128x128xbf16> to vector<128x128xbf16>
    %298 = arith.extf %297 : vector<128x128xbf16> to vector<128x128xf32>
    %cst_85 = arith.constant 0.000000e+00 : f32
    %299 = vector.broadcast %cst_85 : f32 to vector<16x8xf32>
    %300 = arith.subf %299, %286 : vector<16x8xf32>
    %301 = math.exp %300 : vector<16x8xf32>
    %cst_86 = arith.constant 1.000000e+00 : f32
    %302 = vector.broadcast %cst_86 : f32 to vector<16x8xf32>
    %303 = arith.addf %302, %301 : vector<16x8xf32>
    %cst_87 = arith.constant 1.000000e+00 : f32
    %304 = vector.broadcast %cst_87 : f32 to vector<16x8xf32>
    %305 = arith.divf %304, %303 : vector<16x8xf32>
    %306 = arith.mulf %305, %305 : vector<16x8xf32>
    %cst_88 = arith.constant 1.000000e+00 : f32
    %307 = vector.broadcast %cst_88 : f32 to vector<16x8xf32>
    %308 = arith.subf %307, %305 : vector<16x8xf32>
    %cst_89 = arith.constant 1.000000e+00 : f32
    %309 = vector.broadcast %cst_89 : f32 to vector<16x8xf32>
    %310 = arith.subf %309, %305 : vector<16x8xf32>
    %311 = arith.mulf %308, %310 : vector<16x8xf32>
    %cst_90 = arith.constant 7.500000e-01 : f32
    %312 = vector.broadcast %cst_90 : f32 to vector<16x8xf32>
    %313 = arith.mulf %312, %306 : vector<16x8xf32>
    %cst_91 = arith.constant 1.000000e+00 : f32
    %314 = vector.broadcast %cst_91 : f32 to vector<16x8xf32>
    %315 = arith.subf %314, %305 : vector<16x8xf32>
    %cst_92 = arith.constant 9.99999993E-9 : f32
    %316 = vector.broadcast %cst_92 : f32 to vector<16x8xf32>
    %317 = arith.addf %315, %316 : vector<16x8xf32>
    %318 = math.log %317 : vector<16x8xf32>
    %cst_93 = arith.constant 0.000000e+00 : f32
    %319 = vector.broadcast %cst_93 : f32 to vector<16x8xf32>
    %320 = arith.subf %319, %318 : vector<16x8xf32>
    %321 = arith.mulf %313, %320 : vector<16x8xf32>
    %cst_94 = arith.constant 2.500000e-01 : f32
    %322 = vector.broadcast %cst_94 : f32 to vector<16x8xf32>
    %323 = arith.mulf %322, %311 : vector<16x8xf32>
    %cst_95 = arith.constant 9.99999993E-9 : f32
    %324 = vector.broadcast %cst_95 : f32 to vector<16x8xf32>
    %325 = arith.addf %305, %324 : vector<16x8xf32>
    %326 = math.log %325 : vector<16x8xf32>
    %cst_96 = arith.constant 0.000000e+00 : f32
    %327 = vector.broadcast %cst_96 : f32 to vector<16x8xf32>
    %328 = arith.subf %327, %326 : vector<16x8xf32>
    %329 = arith.mulf %323, %328 : vector<16x8xf32>
    %330 = arith.subf %329, %321 : vector<16x8xf32>
    %331 = arith.truncf %330 : vector<16x8xf32> to vector<16x8xbf16>
    %cst_97 = arith.constant dense<0.000000e+00> : vector<16x128xf32>
    %332 = tpu.matmul %331, %288, %cst_97 {dimension_numbers = #tpu.dot_dimension_numbers<[1], [0], [0], [1], [0, 0, 1, 1], [], []>} : vector<16x8xbf16>, vector<8x128xbf16>, vector<16x128xf32> -> vector<16x128xf32>
    %cst_98 = arith.constant 0.000000e+00 : f32
    %333 = vector.broadcast %cst_98 : f32 to vector<16x128xf32>
    %334 = arith.subf %333, %295 : vector<16x128xf32>
    %335 = math.exp %334 : vector<16x128xf32>
    %cst_99 = arith.constant 1.000000e+00 : f32
    %336 = vector.broadcast %cst_99 : f32 to vector<16x128xf32>
    %337 = arith.addf %336, %335 : vector<16x128xf32>
    %338 = tpu.reciprocal %337 {approx = true} : vector<16x128xf32> -> vector<16x128xf32>
    %cst_100 = arith.constant 0.000000e+00 : f32
    %339 = vector.broadcast %cst_100 : f32 to vector<16x128xf32>
    %340 = arith.maximumf %295, %339 : vector<16x128xf32>
    %cst_101 = arith.constant 0.000000e+00 : f32
    %341 = vector.broadcast %cst_101 : f32 to vector<16x128xf32>
    %342 = arith.cmpf oge, %295, %341 : vector<16x128xf32>
    %cst_102 = arith.constant 1.000000e+00 : f32
    %343 = vector.broadcast %cst_102 : f32 to vector<16x128xf32>
    %344 = arith.subf %343, %338 : vector<16x128xf32>
    %345 = arith.select %342, %338, %344 : vector<16x128xi1>, vector<16x128xf32>
    %346 = math.log %345 : vector<16x128xf32>
    %347 = arith.subf %340, %346 : vector<16x128xf32>
    %cst_103 = arith.constant 0.000000e+00 : f32
    %348 = vector.broadcast %cst_103 : f32 to vector<16x128xf32>
    %349 = arith.subf %348, %295 : vector<16x128xf32>
    %350 = tpu.concatenate %349, %338 in 0 : vector<16x128xf32>, vector<16x128xf32> -> vector<32x128xf32>
    %351 = arith.truncf %350 : vector<32x128xf32> to vector<32x128xbf16>
    %cst_104 = arith.constant dense<0.000000e+00> : vector<32x128xf32>
    %352 = tpu.matmul %351, %297, %cst_104 {dimension_numbers = #tpu.dot_dimension_numbers<[1], [0], [0], [1], [0, 0, 1, 1], [], []>} : vector<32x128xbf16>, vector<128x128xbf16>, vector<32x128xf32> -> vector<32x128xf32>
    %353 = vector.extract_strided_slice %352 {offsets = [0, 0], sizes = [16, 128], strides = [1, 1]} : vector<32x128xf32> to vector<16x128xf32>
    %354 = vector.extract_strided_slice %352 {offsets = [16, 0], sizes = [16, 128], strides = [1, 1]} : vector<32x128xf32> to vector<16x128xf32>
    %cst_105 = arith.constant dense<0.000000e+00> : vector<16xf32>
    %355 = vector.multi_reduction <add>, %347, %cst_105 [1] : vector<16x128xf32> to vector<16xf32>
    %356 = vector.shape_cast %355 : vector<16xf32> to vector<16x1xf32>
    %357 = vector.broadcast %356 : vector<16x1xf32> to vector<16x128xf32>
    %358 = arith.addf %353, %357 : vector<16x128xf32>
    %cst_106 = arith.constant 7.812500e-03 : f32
    %359 = vector.broadcast %cst_106 : f32 to vector<16x128xf32>
    %360 = arith.mulf %358, %359 : vector<16x128xf32>
    %cst_107 = arith.constant dense<0.000000e+00> : vector<16xf32>
    %361 = vector.multi_reduction <add>, %338, %cst_107 [1] : vector<16x128xf32> to vector<16xf32>
    %362 = vector.shape_cast %361 : vector<16xf32> to vector<16x1xf32>
    %cst_108 = arith.constant dense<0.000000e+00> : vector<128xf32>
    %363 = vector.multi_reduction <add>, %298, %cst_108 [0] : vector<128x128xf32> to vector<128xf32>
    %364 = vector.shape_cast %363 : vector<128xf32> to vector<1x128xf32>
    %365 = vector.broadcast %362 : vector<16x1xf32> to vector<16x128xf32>
    %366 = vector.broadcast %364 : vector<1x128xf32> to vector<16x128xf32>
    %367 = arith.addf %365, %366 : vector<16x128xf32>
    %cst_109 = arith.constant 2.000000e+00 : f32
    %368 = vector.broadcast %cst_109 : f32 to vector<16x128xf32>
    %369 = arith.mulf %368, %354 : vector<16x128xf32>
    %cst_110 = arith.constant 1.000000e+00 : f32
    %370 = vector.broadcast %cst_110 : f32 to vector<16x128xf32>
    %371 = arith.addf %369, %370 : vector<16x128xf32>
    %cst_111 = arith.constant 1.000000e+00 : f32
    %372 = vector.broadcast %cst_111 : f32 to vector<16x128xf32>
    %373 = arith.addf %367, %372 : vector<16x128xf32>
    %374 = tpu.reciprocal %373 {approx = true} : vector<16x128xf32> -> vector<16x128xf32>
    %375 = arith.mulf %371, %374 : vector<16x128xf32>
    %cst_112 = arith.constant 1.000000e+00 : f32
    %376 = vector.broadcast %cst_112 : f32 to vector<16x128xf32>
    %377 = arith.subf %376, %375 : vector<16x128xf32>
    %cst_113 = arith.constant 0.000000e+00 : f32
    %378 = vector.broadcast %cst_113 : f32 to vector<16x128xf32>
    %379 = vector.extract_strided_slice %290 {offsets = [0, 0], sizes = [16, 1], strides = [1, 1]} : vector<16x6xf32> to vector<16x1xf32>
    %380 = vector.extract_strided_slice %292 {offsets = [0, 0], sizes = [1, 128], strides = [1, 1]} : vector<6x128xf32> to vector<1x128xf32>
    %381 = vector.broadcast %379 : vector<16x1xf32> to vector<16x128xf32>
    %382 = vector.broadcast %380 : vector<1x128xf32> to vector<16x128xf32>
    %383 = arith.subf %381, %382 : vector<16x128xf32>
    %384 = math.absf %383 : vector<16x128xf32>
    %385 = arith.addf %378, %384 : vector<16x128xf32>
    %386 = vector.extract_strided_slice %290 {offsets = [0, 1], sizes = [16, 1], strides = [1, 1]} : vector<16x6xf32> to vector<16x1xf32>
    %387 = vector.extract_strided_slice %292 {offsets = [1, 0], sizes = [1, 128], strides = [1, 1]} : vector<6x128xf32> to vector<1x128xf32>
    %388 = vector.broadcast %386 : vector<16x1xf32> to vector<16x128xf32>
    %389 = vector.broadcast %387 : vector<1x128xf32> to vector<16x128xf32>
    %390 = arith.subf %388, %389 : vector<16x128xf32>
    %391 = math.absf %390 : vector<16x128xf32>
    %392 = arith.addf %385, %391 : vector<16x128xf32>
    %393 = vector.extract_strided_slice %290 {offsets = [0, 2], sizes = [16, 1], strides = [1, 1]} : vector<16x6xf32> to vector<16x1xf32>
    %394 = vector.extract_strided_slice %292 {offsets = [2, 0], sizes = [1, 128], strides = [1, 1]} : vector<6x128xf32> to vector<1x128xf32>
    %395 = vector.broadcast %393 : vector<16x1xf32> to vector<16x128xf32>
    %396 = vector.broadcast %394 : vector<1x128xf32> to vector<16x128xf32>
    %397 = arith.subf %395, %396 : vector<16x128xf32>
    %398 = math.absf %397 : vector<16x128xf32>
    %399 = arith.addf %392, %398 : vector<16x128xf32>
    %400 = vector.extract_strided_slice %290 {offsets = [0, 3], sizes = [16, 1], strides = [1, 1]} : vector<16x6xf32> to vector<16x1xf32>
    %401 = vector.extract_strided_slice %292 {offsets = [3, 0], sizes = [1, 128], strides = [1, 1]} : vector<6x128xf32> to vector<1x128xf32>
    %402 = vector.broadcast %400 : vector<16x1xf32> to vector<16x128xf32>
    %403 = vector.broadcast %401 : vector<1x128xf32> to vector<16x128xf32>
    %404 = arith.subf %402, %403 : vector<16x128xf32>
    %405 = math.absf %404 : vector<16x128xf32>
    %406 = arith.addf %399, %405 : vector<16x128xf32>
    %407 = vector.extract_strided_slice %290 {offsets = [0, 4], sizes = [16, 1], strides = [1, 1]} : vector<16x6xf32> to vector<16x1xf32>
    %408 = vector.extract_strided_slice %292 {offsets = [4, 0], sizes = [1, 128], strides = [1, 1]} : vector<6x128xf32> to vector<1x128xf32>
    %409 = vector.broadcast %407 : vector<16x1xf32> to vector<16x128xf32>
    %410 = vector.broadcast %408 : vector<1x128xf32> to vector<16x128xf32>
    %411 = arith.subf %409, %410 : vector<16x128xf32>
    %412 = math.absf %411 : vector<16x128xf32>
    %413 = arith.addf %406, %412 : vector<16x128xf32>
    %414 = vector.extract_strided_slice %290 {offsets = [0, 5], sizes = [16, 1], strides = [1, 1]} : vector<16x6xf32> to vector<16x1xf32>
    %415 = vector.extract_strided_slice %292 {offsets = [5, 0], sizes = [1, 128], strides = [1, 1]} : vector<6x128xf32> to vector<1x128xf32>
    %416 = vector.broadcast %414 : vector<16x1xf32> to vector<16x128xf32>
    %417 = vector.broadcast %415 : vector<1x128xf32> to vector<16x128xf32>
    %418 = arith.subf %416, %417 : vector<16x128xf32>
    %419 = math.absf %418 : vector<16x128xf32>
    %420 = arith.addf %413, %419 : vector<16x128xf32>
    %421 = vector.extract_strided_slice %290 {offsets = [0, 0], sizes = [16, 3], strides = [1, 1]} : vector<16x6xf32> to vector<16x3xf32>
    %422 = vector.extract_strided_slice %290 {offsets = [0, 3], sizes = [16, 3], strides = [1, 1]} : vector<16x6xf32> to vector<16x3xf32>
    %cst_114 = arith.constant 5.000000e-01 : f32
    %423 = vector.broadcast %cst_114 : f32 to vector<16x3xf32>
    %424 = arith.mulf %423, %422 : vector<16x3xf32>
    %425 = arith.subf %421, %424 : vector<16x3xf32>
    %426 = vector.extract_strided_slice %290 {offsets = [0, 0], sizes = [16, 3], strides = [1, 1]} : vector<16x6xf32> to vector<16x3xf32>
    %427 = vector.extract_strided_slice %290 {offsets = [0, 3], sizes = [16, 3], strides = [1, 1]} : vector<16x6xf32> to vector<16x3xf32>
    %cst_115 = arith.constant 5.000000e-01 : f32
    %428 = vector.broadcast %cst_115 : f32 to vector<16x3xf32>
    %429 = arith.mulf %428, %427 : vector<16x3xf32>
    %430 = arith.addf %426, %429 : vector<16x3xf32>
    %431 = vector.extract_strided_slice %292 {offsets = [0, 0], sizes = [3, 128], strides = [1, 1]} : vector<6x128xf32> to vector<3x128xf32>
    %432 = vector.extract_strided_slice %292 {offsets = [3, 0], sizes = [3, 128], strides = [1, 1]} : vector<6x128xf32> to vector<3x128xf32>
    %cst_116 = arith.constant 5.000000e-01 : f32
    %433 = vector.broadcast %cst_116 : f32 to vector<3x128xf32>
    %434 = arith.mulf %433, %432 : vector<3x128xf32>
    %435 = arith.subf %431, %434 : vector<3x128xf32>
    %436 = vector.extract_strided_slice %292 {offsets = [0, 0], sizes = [3, 128], strides = [1, 1]} : vector<6x128xf32> to vector<3x128xf32>
    %437 = vector.extract_strided_slice %292 {offsets = [3, 0], sizes = [3, 128], strides = [1, 1]} : vector<6x128xf32> to vector<3x128xf32>
    %cst_117 = arith.constant 5.000000e-01 : f32
    %438 = vector.broadcast %cst_117 : f32 to vector<3x128xf32>
    %439 = arith.mulf %438, %437 : vector<3x128xf32>
    %440 = arith.addf %436, %439 : vector<3x128xf32>
    %cst_118 = arith.constant 1.000000e+00 : f32
    %441 = vector.broadcast %cst_118 : f32 to vector<16x128xf32>
    %cst_119 = arith.constant 1.000000e+00 : f32
    %442 = vector.broadcast %cst_119 : f32 to vector<16x128xf32>
    %443 = vector.extract_strided_slice %430 {offsets = [0, 0], sizes = [16, 1], strides = [1, 1]} : vector<16x3xf32> to vector<16x1xf32>
    %444 = vector.extract_strided_slice %440 {offsets = [0, 0], sizes = [1, 128], strides = [1, 1]} : vector<3x128xf32> to vector<1x128xf32>
    %445 = vector.broadcast %443 : vector<16x1xf32> to vector<16x128xf32>
    %446 = vector.broadcast %444 : vector<1x128xf32> to vector<16x128xf32>
    %447 = arith.minimumf %445, %446 : vector<16x128xf32>
    %448 = vector.extract_strided_slice %425 {offsets = [0, 0], sizes = [16, 1], strides = [1, 1]} : vector<16x3xf32> to vector<16x1xf32>
    %449 = vector.extract_strided_slice %435 {offsets = [0, 0], sizes = [1, 128], strides = [1, 1]} : vector<3x128xf32> to vector<1x128xf32>
    %450 = vector.broadcast %448 : vector<16x1xf32> to vector<16x128xf32>
    %451 = vector.broadcast %449 : vector<1x128xf32> to vector<16x128xf32>
    %452 = arith.maximumf %450, %451 : vector<16x128xf32>
    %453 = arith.subf %447, %452 : vector<16x128xf32>
    %cst_120 = arith.constant 0.000000e+00 : f32
    %454 = vector.broadcast %cst_120 : f32 to vector<16x128xf32>
    %455 = arith.maximumf %453, %454 : vector<16x128xf32>
    %456 = arith.mulf %441, %455 : vector<16x128xf32>
    %457 = vector.extract_strided_slice %430 {offsets = [0, 0], sizes = [16, 1], strides = [1, 1]} : vector<16x3xf32> to vector<16x1xf32>
    %458 = vector.extract_strided_slice %440 {offsets = [0, 0], sizes = [1, 128], strides = [1, 1]} : vector<3x128xf32> to vector<1x128xf32>
    %459 = vector.broadcast %457 : vector<16x1xf32> to vector<16x128xf32>
    %460 = vector.broadcast %458 : vector<1x128xf32> to vector<16x128xf32>
    %461 = arith.maximumf %459, %460 : vector<16x128xf32>
    %462 = vector.extract_strided_slice %425 {offsets = [0, 0], sizes = [16, 1], strides = [1, 1]} : vector<16x3xf32> to vector<16x1xf32>
    %463 = vector.extract_strided_slice %435 {offsets = [0, 0], sizes = [1, 128], strides = [1, 1]} : vector<3x128xf32> to vector<1x128xf32>
    %464 = vector.broadcast %462 : vector<16x1xf32> to vector<16x128xf32>
    %465 = vector.broadcast %463 : vector<1x128xf32> to vector<16x128xf32>
    %466 = arith.minimumf %464, %465 : vector<16x128xf32>
    %467 = arith.subf %461, %466 : vector<16x128xf32>
    %cst_121 = arith.constant 0.000000e+00 : f32
    %468 = vector.broadcast %cst_121 : f32 to vector<16x128xf32>
    %469 = arith.maximumf %467, %468 : vector<16x128xf32>
    %470 = arith.mulf %442, %469 : vector<16x128xf32>
    %471 = vector.extract_strided_slice %430 {offsets = [0, 1], sizes = [16, 1], strides = [1, 1]} : vector<16x3xf32> to vector<16x1xf32>
    %472 = vector.extract_strided_slice %440 {offsets = [1, 0], sizes = [1, 128], strides = [1, 1]} : vector<3x128xf32> to vector<1x128xf32>
    %473 = vector.broadcast %471 : vector<16x1xf32> to vector<16x128xf32>
    %474 = vector.broadcast %472 : vector<1x128xf32> to vector<16x128xf32>
    %475 = arith.minimumf %473, %474 : vector<16x128xf32>
    %476 = vector.extract_strided_slice %425 {offsets = [0, 1], sizes = [16, 1], strides = [1, 1]} : vector<16x3xf32> to vector<16x1xf32>
    %477 = vector.extract_strided_slice %435 {offsets = [1, 0], sizes = [1, 128], strides = [1, 1]} : vector<3x128xf32> to vector<1x128xf32>
    %478 = vector.broadcast %476 : vector<16x1xf32> to vector<16x128xf32>
    %479 = vector.broadcast %477 : vector<1x128xf32> to vector<16x128xf32>
    %480 = arith.maximumf %478, %479 : vector<16x128xf32>
    %481 = arith.subf %475, %480 : vector<16x128xf32>
    %cst_122 = arith.constant 0.000000e+00 : f32
    %482 = vector.broadcast %cst_122 : f32 to vector<16x128xf32>
    %483 = arith.maximumf %481, %482 : vector<16x128xf32>
    %484 = arith.mulf %456, %483 : vector<16x128xf32>
    %485 = vector.extract_strided_slice %430 {offsets = [0, 1], sizes = [16, 1], strides = [1, 1]} : vector<16x3xf32> to vector<16x1xf32>
    %486 = vector.extract_strided_slice %440 {offsets = [1, 0], sizes = [1, 128], strides = [1, 1]} : vector<3x128xf32> to vector<1x128xf32>
    %487 = vector.broadcast %485 : vector<16x1xf32> to vector<16x128xf32>
    %488 = vector.broadcast %486 : vector<1x128xf32> to vector<16x128xf32>
    %489 = arith.maximumf %487, %488 : vector<16x128xf32>
    %490 = vector.extract_strided_slice %425 {offsets = [0, 1], sizes = [16, 1], strides = [1, 1]} : vector<16x3xf32> to vector<16x1xf32>
    %491 = vector.extract_strided_slice %435 {offsets = [1, 0], sizes = [1, 128], strides = [1, 1]} : vector<3x128xf32> to vector<1x128xf32>
    %492 = vector.broadcast %490 : vector<16x1xf32> to vector<16x128xf32>
    %493 = vector.broadcast %491 : vector<1x128xf32> to vector<16x128xf32>
    %494 = arith.minimumf %492, %493 : vector<16x128xf32>
    %495 = arith.subf %489, %494 : vector<16x128xf32>
    %cst_123 = arith.constant 0.000000e+00 : f32
    %496 = vector.broadcast %cst_123 : f32 to vector<16x128xf32>
    %497 = arith.maximumf %495, %496 : vector<16x128xf32>
    %498 = arith.mulf %470, %497 : vector<16x128xf32>
    %499 = vector.extract_strided_slice %430 {offsets = [0, 2], sizes = [16, 1], strides = [1, 1]} : vector<16x3xf32> to vector<16x1xf32>
    %500 = vector.extract_strided_slice %440 {offsets = [2, 0], sizes = [1, 128], strides = [1, 1]} : vector<3x128xf32> to vector<1x128xf32>
    %501 = vector.broadcast %499 : vector<16x1xf32> to vector<16x128xf32>
    %502 = vector.broadcast %500 : vector<1x128xf32> to vector<16x128xf32>
    %503 = arith.minimumf %501, %502 : vector<16x128xf32>
    %504 = vector.extract_strided_slice %425 {offsets = [0, 2], sizes = [16, 1], strides = [1, 1]} : vector<16x3xf32> to vector<16x1xf32>
    %505 = vector.extract_strided_slice %435 {offsets = [2, 0], sizes = [1, 128], strides = [1, 1]} : vector<3x128xf32> to vector<1x128xf32>
    %506 = vector.broadcast %504 : vector<16x1xf32> to vector<16x128xf32>
    %507 = vector.broadcast %505 : vector<1x128xf32> to vector<16x128xf32>
    %508 = arith.maximumf %506, %507 : vector<16x128xf32>
    %509 = arith.subf %503, %508 : vector<16x128xf32>
    %cst_124 = arith.constant 0.000000e+00 : f32
    %510 = vector.broadcast %cst_124 : f32 to vector<16x128xf32>
    %511 = arith.maximumf %509, %510 : vector<16x128xf32>
    %512 = arith.mulf %484, %511 : vector<16x128xf32>
    %513 = vector.extract_strided_slice %430 {offsets = [0, 2], sizes = [16, 1], strides = [1, 1]} : vector<16x3xf32> to vector<16x1xf32>
    %514 = vector.extract_strided_slice %440 {offsets = [2, 0], sizes = [1, 128], strides = [1, 1]} : vector<3x128xf32> to vector<1x128xf32>
    %515 = vector.broadcast %513 : vector<16x1xf32> to vector<16x128xf32>
    %516 = vector.broadcast %514 : vector<1x128xf32> to vector<16x128xf32>
    %517 = arith.maximumf %515, %516 : vector<16x128xf32>
    %518 = vector.extract_strided_slice %425 {offsets = [0, 2], sizes = [16, 1], strides = [1, 1]} : vector<16x3xf32> to vector<16x1xf32>
    %519 = vector.extract_strided_slice %435 {offsets = [2, 0], sizes = [1, 128], strides = [1, 1]} : vector<3x128xf32> to vector<1x128xf32>
    %520 = vector.broadcast %518 : vector<16x1xf32> to vector<16x128xf32>
    %521 = vector.broadcast %519 : vector<1x128xf32> to vector<16x128xf32>
    %522 = arith.minimumf %520, %521 : vector<16x128xf32>
    %523 = arith.subf %517, %522 : vector<16x128xf32>
    %cst_125 = arith.constant 0.000000e+00 : f32
    %524 = vector.broadcast %cst_125 : f32 to vector<16x128xf32>
    %525 = arith.maximumf %523, %524 : vector<16x128xf32>
    %526 = arith.mulf %498, %525 : vector<16x128xf32>
    %527 = vector.extract_strided_slice %290 {offsets = [0, 3], sizes = [16, 1], strides = [1, 1]} : vector<16x6xf32> to vector<16x1xf32>
    %528 = vector.extract_strided_slice %290 {offsets = [0, 4], sizes = [16, 1], strides = [1, 1]} : vector<16x6xf32> to vector<16x1xf32>
    %529 = arith.mulf %527, %528 : vector<16x1xf32>
    %530 = vector.extract_strided_slice %290 {offsets = [0, 5], sizes = [16, 1], strides = [1, 1]} : vector<16x6xf32> to vector<16x1xf32>
    %531 = arith.mulf %529, %530 : vector<16x1xf32>
    %532 = vector.extract_strided_slice %292 {offsets = [3, 0], sizes = [1, 128], strides = [1, 1]} : vector<6x128xf32> to vector<1x128xf32>
    %533 = vector.extract_strided_slice %292 {offsets = [4, 0], sizes = [1, 128], strides = [1, 1]} : vector<6x128xf32> to vector<1x128xf32>
    %534 = arith.mulf %532, %533 : vector<1x128xf32>
    %535 = vector.extract_strided_slice %292 {offsets = [5, 0], sizes = [1, 128], strides = [1, 1]} : vector<6x128xf32> to vector<1x128xf32>
    %536 = arith.mulf %534, %535 : vector<1x128xf32>
    %537 = vector.broadcast %531 : vector<16x1xf32> to vector<16x128xf32>
    %538 = vector.broadcast %536 : vector<1x128xf32> to vector<16x128xf32>
    %539 = arith.addf %537, %538 : vector<16x128xf32>
    %540 = arith.subf %539, %512 : vector<16x128xf32>
    %cst_126 = arith.constant 1.000000e-07 : f32
    %541 = vector.broadcast %cst_126 : f32 to vector<16x128xf32>
    %542 = arith.addf %540, %541 : vector<16x128xf32>
    %543 = tpu.reciprocal %542 {approx = true} : vector<16x128xf32> -> vector<16x128xf32>
    %cst_127 = arith.constant 1.000000e-07 : f32
    %544 = vector.broadcast %cst_127 : f32 to vector<16x128xf32>
    %545 = arith.addf %526, %544 : vector<16x128xf32>
    %546 = tpu.reciprocal %545 {approx = true} : vector<16x128xf32> -> vector<16x128xf32>
    %547 = arith.mulf %512, %543 : vector<16x128xf32>
    %548 = arith.subf %526, %540 : vector<16x128xf32>
    %549 = arith.mulf %548, %546 : vector<16x128xf32>
    %550 = arith.subf %547, %549 : vector<16x128xf32>
    %cst_128 = arith.constant 0.000000e+00 : f32
    %551 = vector.broadcast %cst_128 : f32 to vector<16x128xf32>
    %552 = arith.subf %551, %550 : vector<16x128xf32>
    %cst_129 = arith.constant 5.000000e+00 : f32
    %553 = vector.broadcast %cst_129 : f32 to vector<16x128xf32>
    %554 = arith.mulf %553, %360 : vector<16x128xf32>
    %cst_130 = arith.constant 2.000000e+00 : f32
    %555 = vector.broadcast %cst_130 : f32 to vector<16x128xf32>
    %556 = arith.mulf %555, %332 : vector<16x128xf32>
    %557 = arith.addf %554, %556 : vector<16x128xf32>
    %cst_131 = arith.constant 5.000000e+00 : f32
    %558 = vector.broadcast %cst_131 : f32 to vector<16x128xf32>
    %559 = arith.mulf %558, %377 : vector<16x128xf32>
    %560 = arith.addf %557, %559 : vector<16x128xf32>
    %cst_132 = arith.constant 5.000000e+00 : f32
    %561 = vector.broadcast %cst_132 : f32 to vector<16x128xf32>
    %562 = arith.mulf %561, %420 : vector<16x128xf32>
    %563 = arith.addf %560, %562 : vector<16x128xf32>
    %cst_133 = arith.constant 2.000000e+00 : f32
    %564 = vector.broadcast %cst_133 : f32 to vector<16x128xf32>
    %565 = arith.mulf %564, %552 : vector<16x128xf32>
    %566 = arith.addf %563, %565 : vector<16x128xf32>
    %c1_134 = arith.constant 1 : index
    %c0_135 = arith.constant 0 : index
    %c0_136 = arith.constant 0 : index
    %567 = vector.load %arg7[%c1_134, %c0_135, %c0_136] : memref<2x16x128xf32, #tpu.memory_space<vmem>>, vector<1x16x128xf32>
    %568 = vector.shape_cast %567 : vector<1x16x128xf32> to vector<16x128xf32>
    %569 = vector.shape_cast %566 : vector<16x128xf32> to vector<1x16x128xf32>
    tpu.vector_store %arg7[%c1_134, %c0_135, %c0_136], %569 {strides = array<i32>} : memref<2x16x128xf32, #tpu.memory_space<vmem>>, vector<1x16x128xf32>,
    return
  }
  func.func @transform_0(%arg0: i32) -> (i32, i32, i32) {
    %c0_i32 = arith.constant 0 : i32
    %c0_i32_0 = arith.constant 0 : i32
    %c0_i32_1 = arith.constant 0 : i32
    return %arg0, %c0_i32, %c0_i32_0 : i32, i32, i32
  }
  func.func @transform_1(%arg0: i32) -> (i32, i32, i32) {
    %c0_i32 = arith.constant 0 : i32
    %c0_i32_0 = arith.constant 0 : i32
    %c0_i32_1 = arith.constant 0 : i32
    return %arg0, %c0_i32, %c0_i32_0 : i32, i32, i32
  }
  func.func @transform_2(%arg0: i32) -> (i32, i32, i32) {
    %c0_i32 = arith.constant 0 : i32
    %c0_i32_0 = arith.constant 0 : i32
    %c0_i32_1 = arith.constant 0 : i32
    return %arg0, %c0_i32, %c0_i32_0 : i32, i32, i32
  }
  func.func @transform_3(%arg0: i32) -> (i32, i32, i32) {
    %c0_i32 = arith.constant 0 : i32
    %c0_i32_0 = arith.constant 0 : i32
    %c0_i32_1 = arith.constant 0 : i32
    return %arg0, %c0_i32, %c0_i32_0 : i32, i32, i32
  }
  func.func @transform_4(%arg0: i32) -> (i32, i32, i32) {
    %c0_i32 = arith.constant 0 : i32
    %c0_i32_0 = arith.constant 0 : i32
    %c0_i32_1 = arith.constant 0 : i32
    return %arg0, %c0_i32, %c0_i32_0 : i32, i32, i32
  }
  func.func @transform_5(%arg0: i32) -> (i32, i32, i32) {
    %c0_i32 = arith.constant 0 : i32
    %c0_i32_0 = arith.constant 0 : i32
    %c0_i32_1 = arith.constant 0 : i32
    return %arg0, %c0_i32, %c0_i32_0 : i32, i32, i32
  }
  func.func @transform_6(%arg0: i32) -> (i32, i32, i32) {
    %c0_i32 = arith.constant 0 : i32
    %c0_i32_0 = arith.constant 0 : i32
    %c0_i32_1 = arith.constant 0 : i32
    return %arg0, %c0_i32, %c0_i32_0 : i32, i32, i32
  }
}

</mosaic_0001>

<llo_original>
// kernel: tpu_custom_call.1
$region0: #{tpu_custom_call.1}
  #allocation0 [shape = 'u32[]', space=smem, size = 0x4, offset = 0x4, fixed_abs, tag = 'smem constant byte address 0x4 - core index']
  #allocation1 [shape = 'u32[144,128]{1,0:T(1,128)}', space=vmem, size = 0x12000, scoped, tag = 'internal scratch']
  %s0 = inlined_call_operand.vmem [shape: f32[2,16,8], index: 0, kind: input, shape index: {}]
  %s1 = inlined_call_operand.hbm [shape: bf16[2,8,128], index: 1, kind: input, shape index: {}]
  %s2 = inlined_call_operand.vmem [shape: f32[2,16,6], index: 2, kind: input, shape index: {}]
  %s3 = inlined_call_operand.vmem [shape: f32[2,6,128], index: 3, kind: input, shape index: {}]
  %s4 = inlined_call_operand.hbm [shape: bf16[2,16,128], index: 4, kind: input, shape index: {}]
  %s5 = inlined_call_operand.vmem [shape: bf16[2,128,128], index: 5, kind: input, shape index: {}]
  %s6 = inlined_call_operand.hbm [shape: f32[2,16,128], index: 6, kind: output, shape index: {}]
  %s7 = sld [smem:[#allocation0]]
  $region42: #{tpu_custom_call.1} parent=0
    _
  %s9 = ssub.s32 1, %s7
  %s10 = scalar_select 0, %s9, %s7
  $region1: #{tpu_custom_call.1} parent=0
    #allocation2 [shape = 'u8[4096]{0}', space=vmem, size = 0x1000, scoped, tag = 'input window, operand 1, single buffered']
    #allocation3 [shape = 's32[1]{0}', space=sflag, size = 0x4, scoped, tag = 'scoped memory for tpu_custom_call.1']
    #allocation4 [shape = 's32[1]{0}', space=sflag, size = 0x4, scoped, tag = 'scoped memory for tpu_custom_call.1']
    #allocation5 [shape = 'u8[8192]{0}', space=vmem, size = 0x2000, scoped, tag = 'input window, operand 4, single buffered']
    #allocation6 [shape = 's32[1]{0}', space=sflag, size = 0x4, scoped, tag = 'scoped memory for tpu_custom_call.1']
    #allocation7 [shape = 'u8[16384]{0}', space=vmem, size = 0x4000, scoped, tag = 'output window, operand 0, single buffered']
    %11 = vsyncpa [#allocation3], 0
    %12 = vsyncpa [#allocation6], 0
    %13 = vsyncpa [#allocation4], 0
    // Predicated region
    $region2: #{tpu_custom_call.1} parent=1 // pred_check
      _
    $region3: #{tpu_custom_call.1} parent=1 // pred_check_branch
      %15 = sbr.rel (0) target = $region5
    $region4: #{tpu_custom_call.1} parent=1 // pred_region
      _
    $region5: #{tpu_custom_call.1} parent=1 // pred_fallthru
      _
    // Predicated region
    $region6: #{tpu_custom_call.1} parent=1 // pred_check
      _
    $region7: #{tpu_custom_call.1} parent=1 // pred_check_branch
      %17 = sbr.rel (0) target = $region9
    $region8: #{tpu_custom_call.1} parent=1 // pred_region
      %s19 = ssub.s32 128, 128
      %20 = vsyncadd [#allocation3], %s19
      %s21 = sshll.u32 [#allocation2], 4
      %s22 = int_to_ptr.vmem [resolvable:$true] %s21
      %27 = dma.hbm_to_vmem [thread:$0]  %s1, 128, %s22, [#allocation3], 64, 64, 4
    $region9: #{tpu_custom_call.1} parent=1 // pred_fallthru
      _
    // Predicated region
    $region10: #{tpu_custom_call.1} parent=1 // pred_check
      _
    $region11: #{tpu_custom_call.1} parent=1 // pred_check_branch
      %29 = sbr.rel (0) target = $region13
    $region12: #{tpu_custom_call.1} parent=1 // pred_region
      _
    $region13: #{tpu_custom_call.1} parent=1 // pred_fallthru
      _
    // Predicated region
    $region14: #{tpu_custom_call.1} parent=1 // pred_check
      _
    $region15: #{tpu_custom_call.1} parent=1 // pred_check_branch
      %31 = sbr.rel (0) target = $region17
    $region16: #{tpu_custom_call.1} parent=1 // pred_region
      _
    $region17: #{tpu_custom_call.1} parent=1 // pred_fallthru
      _
    // Predicated region
    $region18: #{tpu_custom_call.1} parent=1 // pred_check
      _
    $region19: #{tpu_custom_call.1} parent=1 // pred_check_branch
      %33 = sbr.rel (0) target = $region21
    $region20: #{tpu_custom_call.1} parent=1 // pred_region
      %s35 = ssub.s32 256, 256
      %36 = vsyncadd [#allocation6], %s35
      %s37 = sshll.u32 [#allocation5], 4
      %s38 = int_to_ptr.vmem [resolvable:$true] %s37
      %43 = dma.hbm_to_vmem [thread:$0]  %s4, 256, %s38, [#allocation6], 64, 64, 4
    $region21: #{tpu_custom_call.1} parent=1 // pred_fallthru
      _
    // Predicated region
    $region22: #{tpu_custom_call.1} parent=1 // pred_check
      _
    $region23: #{tpu_custom_call.1} parent=1 // pred_check_branch
      %45 = sbr.rel (0) target = $region25
    $region24: #{tpu_custom_call.1} parent=1 // pred_region
      _
    $region25: #{tpu_custom_call.1} parent=1 // pred_fallthru
      _
    // Predicated region
    $region26: #{tpu_custom_call.1} parent=1 // pred_check
      _
    $region27: #{tpu_custom_call.1} parent=1 // pred_check_branch
      %47 = sbr.rel (0) target = $region29
    $region28: #{tpu_custom_call.1} parent=1 // pred_region
      %48 = dma.done [#allocation3], 128
    $region29: #{tpu_custom_call.1} parent=1 // pred_fallthru
      _
    // Predicated region
    $region30: #{tpu_custom_call.1} parent=1 // pred_check
      _
    $region31: #{tpu_custom_call.1} parent=1 // pred_check_branch
      %50 = sbr.rel (0) target = $region33
    $region32: #{tpu_custom_call.1} parent=1 // pred_region
      %51 = dma.done [#allocation6], 256
    $region33: #{tpu_custom_call.1} parent=1 // pred_fallthru
      _
    %v53 = vld [vmem:[%s0] sm:$0xff]
    %v54 = vld [vmem:[%s0 + $0x8] sm:$0xff]
    %v55 = vld [vmem:[#allocation2] sm:$0xf]
    %v56 = vld [vmem:[%s2] sm:$0xff]
    %v57 = vld [vmem:[%s2 + $0x8] sm:$0xff]
    %v58 = vld [vmem:[%s3] sm:$0x3f]
    %v59 = vld [vmem:[#allocation5] sm:$0xf]
    %v60 = vld [vmem:[#allocation5 + $0x4] sm:$0xf]
    %v61 = vunpack.c.l.bf16 %v59
    %v62 = vunpack.c.l.bf16 %v60
    %v63 = vld [vmem:[%s5] sm:$0xf]
    %v64 = vld [vmem:[%s5 + $0x4] sm:$0xf]
    %v65 = vld [vmem:[%s5 + $0x8] sm:$0xf]
    %v66 = vld [vmem:[%s5 + $0xc] sm:$0xf]
    %v67 = vld [vmem:[%s5 + $0x10] sm:$0xf]
    %v68 = vld [vmem:[%s5 + $0x14] sm:$0xf]
    %v69 = vld [vmem:[%s5 + $0x18] sm:$0xf]
    %v70 = vld [vmem:[%s5 + $0x1c] sm:$0xf]
    %v71 = vld [vmem:[%s5 + $0x20] sm:$0xf]
    %v72 = vld [vmem:[%s5 + $0x24] sm:$0xf]
    %v73 = vld [vmem:[%s5 + $0x28] sm:$0xf]
    %v74 = vld [vmem:[%s5 + $0x2c] sm:$0xf]
    %v75 = vld [vmem:[%s5 + $0x30] sm:$0xf]
    %v76 = vld [vmem:[%s5 + $0x34] sm:$0xf]
    %v77 = vld [vmem:[%s5 + $0x38] sm:$0xf]
    %v78 = vld [vmem:[%s5 + $0x3c] sm:$0xf]
    %v79 = vunpack.c.l.bf16 %v63
    %v80 = vunpack.c.l.bf16 %v64
    %v81 = vunpack.c.l.bf16 %v65
    %v82 = vunpack.c.l.bf16 %v66
    %v83 = vunpack.c.l.bf16 %v67
    %v84 = vunpack.c.l.bf16 %v68
    %v85 = vunpack.c.l.bf16 %v69
    %v86 = vunpack.c.l.bf16 %v70
    %v87 = vunpack.c.l.bf16 %v71
    %v88 = vunpack.c.l.bf16 %v72
    %v89 = vunpack.c.l.bf16 %v73
    %v90 = vunpack.c.l.bf16 %v74
    %v91 = vunpack.c.l.bf16 %v75
    %v92 = vunpack.c.l.bf16 %v76
    %v93 = vunpack.c.l.bf16 %v77
    %v94 = vunpack.c.l.bf16 %v78
    %v95 = vsub.f32 0.0, %v53
    %v96 = vsub.f32 0.0, %v54
    %v97 = vmul.f32 %v95, 1.442695
    %v98 = vpow.pop %v97
    %v99 = vmul.f32 %v96, 1.442695
    %v100 = vpow.pop %v99
    %v101 = vadd.f32 %v98, 1.0
    %v102 = vadd.f32 %v100, 1.0
    %v103 = vrcp.pop %v101
    %v104 = vmul.f32 1.0, %v103
    %v105 = vrcp.pop %v102
    %v106 = vmul.f32 1.0, %v105
    %v107 = vmul.f32 %v104, %v104
    %v108 = vmul.f32 %v106, %v106
    %v109 = vsub.f32 1.0, %v104
    %v110 = vsub.f32 1.0, %v106
    %v111 = vmul.f32 %v109, %v109
    %v112 = vmul.f32 %v110, %v110
    %v113 = vmul.f32 %v107, 0.75
    %v114 = vmul.f32 %v108, 0.75
    %v115 = vadd.f32 %v109, 1e-08
    %v116 = vadd.f32 %v110, 1e-08
    %v117 = vlog2.pop %v115
    %v118 = vmul.f32 %v117, 0.6931472
    %v119 = vlog2.pop %v116
    %v120 = vmul.f32 %v119, 0.6931472
    %v121 = vsub.f32 0.0, %v118
    %v122 = vsub.f32 0.0, %v120
    %v123 = vmul.f32 %v113, %v121
    %v124 = vmul.f32 %v114, %v122
    %v125 = vmul.f32 %v111, 0.25
    %v126 = vmul.f32 %v112, 0.25
    %v127 = vadd.f32 %v104, 1e-08
    %v128 = vadd.f32 %v106, 1e-08
    %v129 = vlog2.pop %v127
    %v130 = vmul.f32 %v129, 0.6931472
    %v131 = vlog2.pop %v128
    %v132 = vmul.f32 %v131, 0.6931472
    %v133 = vsub.f32 0.0, %v130
    %v134 = vsub.f32 0.0, %v132
    %v135 = vmul.f32 %v125, %v133
    %v136 = vmul.f32 %v126, %v134
    %v137 = vsub.f32 %v135, %v123
    %v138 = vsub.f32 %v136, %v124
    %v139 = vpack.c.bf16 %v138, %v137
    %vm140 = vcmask 64512
    %v142 = vsel %vm140, %v139, 0
    %vm144 = vcmask 1043456
    %v146 = vsel %vm144, %v55, 0
    %148 = vmatprep.subr.bf16.mxu0 0
    %149 = vmatpush1.bf16.msra.mxu0 0
    %150 = vmatprep.subr.bf16.mxu0 0
    %151 = vmatpush1.bf16.msra.mxu0 0
    %152 = vmatprep.subr.bf16.mxu0 0
    %153 = vmatpush1.bf16.msra.mxu0 0
    %154 = vmatprep.subr.bf16.mxu0 0
    %155 = vmatpush1.bf16.msra.mxu0 0
    %156 = vmatprep.subr.bf16.mxu0 0
    %157 = vmatpush1.bf16.msra.mxu0 0
    %158 = vmatprep.subr.bf16.mxu0 0
    %159 = vmatpush1.bf16.msra.mxu0 0
    %160 = vmatprep.subr.bf16.mxu0 0
    %161 = vmatpush1.bf16.msra.mxu0 0
    %162 = vmatprep.subr.bf16.mxu0 0
    %163 = vmatpush1.bf16.msra.mxu0 %v146
    %164 = vmatprep.subr.bf16.mxu0 0
    %165 = vmatpush2.bf16.msra.mxu0 0
    %166 = vmatprep.subr.bf16.mxu0 0
    %167 = vmatpush2.bf16.msra.mxu0 0
    %168 = vmatprep.subr.bf16.mxu0 0
    %169 = vmatpush2.bf16.msra.mxu0 0
    %170 = vmatprep.subr.bf16.mxu0 0
    %171 = vmatpush2.bf16.msra.mxu0 0
    %172 = vmatprep.subr.bf16.mxu0 0
    %173 = vmatpush2.bf16.msra.mxu0 0
    %174 = vmatprep.subr.bf16.mxu0 0
    %175 = vmatpush2.bf16.msra.mxu0 0
    %176 = vmatprep.subr.bf16.mxu0 0
    %177 = vmatpush2.bf16.msra.mxu0 0
    %178 = vmatprep.subr.bf16.mxu0 0
    %179 = vmatpush2.bf16.msra.mxu0 0
    %180 = vmatprep.mubr.bf16.mxu0 0
    %181 = vmatmul.mubr.bf16.gmra.mxu0 %v142
    %v182 = vpop.f32.mrf.mxu0
    %v183 = vadd.f32 0.0, %v182
    %v184 = vpop.f32.mrf.mxu0
    %v185 = vpop.f32.mrf.mxu0
    %v186 = vadd.f32 0.0, %v185
    %v187 = vpop.f32.mrf.mxu0
    %188 = vdwg.mxu0
    %v189 = vsub.f32 0.0, %v61
    %v190 = vsub.f32 0.0, %v62
    %v191 = vmul.f32 %v189, 1.442695
    %v192 = vpow.pop %v191
    %v193 = vmul.f32 %v190, 1.442695
    %v194 = vpow.pop %v193
    %v195 = vadd.f32 %v192, 1.0
    %v196 = vadd.f32 %v194, 1.0
    %v197 = vrcp.pop %v195
    %v198 = vrcp.pop %v196
    %v199 = vmax.f32 %v61, 0.0
    %v200 = vmax.f32 %v62, 0.0
    %vm201 = vcmp.ge.f32.partialorder %v61, 0.0
    %vm202 = vcmp.ge.f32.partialorder %v62, 0.0
    %v203 = vsub.f32 1.0, %v197
    %v204 = vsub.f32 1.0, %v198
    %v205 = vsel %vm201, %v197, %v203
    %v206 = vsel %vm202, %v198, %v204
    %v207 = vlog2.pop %v205
    %v208 = vmul.f32 %v207, 0.6931472
    %v209 = vlog2.pop %v206
    %v210 = vmul.f32 %v209, 0.6931472
    %v211 = vsub.f32 %v199, %v208
    %v212 = vsub.f32 %v200, %v210
    %v213 = vpack.c.bf16 %v190, %v189
    %v214 = vpack.c.bf16 %v198, %v197
    %v231 = vunpack.c.l.b16 %v63
    %v232 = vunpack.c.l.b16 %v64
    %v233 = vunpack.c.l.b16 %v65
    %v234 = vunpack.c.l.b16 %v66
    %v235 = vunpack.c.l.b16 %v67
    %v236 = vunpack.c.l.b16 %v68
    %v237 = vunpack.c.l.b16 %v69
    %v238 = vunpack.c.l.b16 %v70
    %v239 = vunpack.c.l.b16 %v71
    %v240 = vunpack.c.l.b16 %v72
    %v241 = vunpack.c.l.b16 %v73
    %v242 = vunpack.c.l.b16 %v74
    %v243 = vunpack.c.l.b16 %v75
    %v244 = vunpack.c.l.b16 %v76
    %v245 = vunpack.c.l.b16 %v77
    %v246 = vunpack.c.l.b16 %v78
    %v247 = vpack.c.b16 %v232, %v231
    %v248 = vpack.c.b16 %v234, %v233
    %v249 = vpack.c.b16 %v236, %v235
    %v250 = vpack.c.b16 %v238, %v237
    %v251 = vpack.c.b16 %v240, %v239
    %v252 = vpack.c.b16 %v242, %v241
    %v253 = vpack.c.b16 %v244, %v243
    %v254 = vpack.c.b16 %v246, %v245
    %263 = vmatprep.subr.bf16.mxu0 0
    %264 = vmatpush1.bf16.msra.mxu0 %v254
    %265 = vmatprep.subr.bf16.mxu0 0
    %266 = vmatpush1.bf16.msra.mxu0 %v253
    %267 = vmatprep.subr.bf16.mxu0 0
    %268 = vmatpush1.bf16.msra.mxu0 %v252
    %269 = vmatprep.subr.bf16.mxu0 0
    %270 = vmatpush1.bf16.msra.mxu0 %v251
    %271 = vmatprep.subr.bf16.mxu0 0
    %272 = vmatpush1.bf16.msra.mxu0 %v250
    %273 = vmatprep.subr.bf16.mxu0 0
    %274 = vmatpush1.bf16.msra.mxu0 %v249
    %275 = vmatprep.subr.bf16.mxu0 0
    %276 = vmatpush1.bf16.msra.mxu0 %v248
    %277 = vmatprep.subr.bf16.mxu0 0
    %278 = vmatpush1.bf16.msra.mxu0 %v247
    %279 = vmatprep.subr.bf16.mxu0 0
    %280 = vmatpush2.bf16.msra.mxu0 0
    %281 = vmatprep.subr.bf16.mxu0 0
    %282 = vmatpush2.bf16.msra.mxu0 0
    %283 = vmatprep.subr.bf16.mxu0 0
    %284 = vmatpush2.bf16.msra.mxu0 0
    %285 = vmatprep.subr.bf16.mxu0 0
    %286 = vmatpush2.bf16.msra.mxu0 0
    %287 = vmatprep.subr.bf16.mxu0 0
    %288 = vmatpush2.bf16.msra.mxu0 0
    %289 = vmatprep.subr.bf16.mxu0 0
    %290 = vmatpush2.bf16.msra.mxu0 0
    %291 = vmatprep.subr.bf16.mxu0 0
    %292 = vmatpush2.bf16.msra.mxu0 0
    %293 = vmatprep.subr.bf16.mxu0 0
    %294 = vmatpush2.bf16.msra.mxu0 0
    %295 = vmatprep.mubr.bf16.mxu0 0
    %296 = vmatmul.mubr.bf16.gmra.mxu0 %v213
    %v297 = vpop.f32.mrf.mxu0
    %v298 = vadd.f32 0.0, %v297
    %v299 = vpop.f32.mrf.mxu0
    %v300 = vpop.f32.mrf.mxu0
    %v301 = vadd.f32 0.0, %v300
    %v302 = vpop.f32.mrf.mxu0
    %303 = vmatprep.mubr.bf16.mxu0 0
    %304 = vmatmul.mubr.bf16.gmra.mxu0 %v214
    %v305 = vpop.f32.mrf.mxu0
    %v306 = vadd.f32 0.0, %v305
    %v307 = vpop.f32.mrf.mxu0
    %v308 = vpop.f32.mrf.mxu0
    %v309 = vadd.f32 0.0, %v308
    %v310 = vpop.f32.mrf.mxu0
    %311 = vdwg.mxu0
    %312 = vadd.xlane.f32.xlu0 %v211
    %v313 = vpop.xlane.xlu0 %312
    %314 = vadd.xlane.f32.xlu0 %v212
    %v315 = vpop.xlane.xlu0 %314
    %v316 = vadd.f32 %v298, %v313
    %v317 = vadd.f32 %v301, %v315
    %v318 = vmul.f32 %v316, 0.0078125
    %v319 = vmul.f32 %v317, 0.0078125
    %320 = vadd.xlane.f32.xlu0 %v197
    %v321 = vpop.xlane.xlu0 %320
    %322 = vadd.xlane.f32.xlu0 %v198
    %v323 = vpop.xlane.xlu0 %322
    %v324 = vadd.f32 %v79, %v80
    %v325 = vadd.f32 %v324, %v81
    %v326 = vadd.f32 %v325, %v82
    %v327 = vadd.f32 %v326, %v83
    %v328 = vadd.f32 %v327, %v84
    %v329 = vadd.f32 %v328, %v85
    %v330 = vadd.f32 %v329, %v86
    %v331 = vadd.f32 %v330, %v87
    %v332 = vadd.f32 %v331, %v88
    %v333 = vadd.f32 %v332, %v89
    %v334 = vadd.f32 %v333, %v90
    %v335 = vadd.f32 %v334, %v91
    %v336 = vadd.f32 %v335, %v92
    %v337 = vadd.f32 %v336, %v93
    %v338 = vadd.f32 %v337, %v94
    %v339 = vrot.slane %v338, 4
    %v340 = vadd.f32 %v338, %v339
    %v341 = vrot.slane %v340, 2
    %v342 = vadd.f32 %v340, %v341
    %v343 = vrot.slane %v342, 1
    %v344 = vadd.f32 %v342, %v343
    %v345 = vadd.f32 %v321, %v344
    %v346 = vadd.f32 %v323, %v344
    %v347 = vmul.f32 %v306, 2.0
    %v348 = vmul.f32 %v309, 2.0
    %v349 = vadd.f32 %v347, 1.0
    %v350 = vadd.f32 %v348, 1.0
    %v351 = vadd.f32 %v345, 1.0
    %v352 = vadd.f32 %v346, 1.0
    %v353 = vrcp.pop %v351
    %v354 = vrcp.pop %v352
    %v355 = vmul.f32 %v349, %v353
    %v356 = vmul.f32 %v350, %v354
    %v357 = vsub.f32 1.0, %v355
    %v358 = vsub.f32 1.0, %v356
    %360 = vset.pattern.permute.xlu0 0
    %361 = vperm.xlu0 %360, %v56
    %v362 = vpop.permute.xlu0 %361
    %365 = vset.pattern.permute.xlu0 0
    %366 = vperm.xlu0 %365, %v57
    %v367 = vpop.permute.xlu0 %366
    %v369 = vlaneseq
    %v370 = vshrl.u32 %v369, 7
    %v371 = vsub.s32 0, %v370
    %v372 = vrot.slane %v58, %v371
    %v373 = vsub.f32 %v362, %v372
    %v374 = vsub.f32 %v367, %v372
    %v375 = vand.u32 2147483647, %v373
    %v376 = vand.u32 2147483647, %v374
    %v377 = vadd.f32 %v375, 0.0
    %v378 = vadd.f32 %v376, 0.0
    %379 = vset.pattern.permute.xlu0 1
    %380 = vperm.xlu0 %379, %v56
    %v381 = vpop.permute.xlu0 %380
    %383 = vset.pattern.permute.xlu0 1
    %384 = vperm.xlu0 %383, %v57
    %v385 = vpop.permute.xlu0 %384
    %v387 = vlaneseq
    %v388 = vshrl.u32 %v387, 7
    %v389 = vsub.s32 1, %v388
    %v390 = vrot.slane %v58, %v389
    %v391 = vsub.f32 %v381, %v390
    %v392 = vsub.f32 %v385, %v390
    %v393 = vand.u32 2147483647, %v391
    %v394 = vand.u32 2147483647, %v392
    %v395 = vadd.f32 %v377, %v393
    %v396 = vadd.f32 %v378, %v394
    %397 = vset.pattern.permute.xlu0 2
    %398 = vperm.xlu0 %397, %v56
    %v399 = vpop.permute.xlu0 %398
    %401 = vset.pattern.permute.xlu0 2
    %402 = vperm.xlu0 %401, %v57
    %v403 = vpop.permute.xlu0 %402
    %v405 = vlaneseq
    %v406 = vshrl.u32 %v405, 7
    %v407 = vsub.s32 2, %v406
    %v408 = vrot.slane %v58, %v407
    %v409 = vsub.f32 %v399, %v408
    %v410 = vsub.f32 %v403, %v408
    %v411 = vand.u32 2147483647, %v409
    %v412 = vand.u32 2147483647, %v410
    %v413 = vadd.f32 %v395, %v411
    %v414 = vadd.f32 %v396, %v412
    %415 = vset.pattern.permute.xlu0 3
    %416 = vperm.xlu0 %415, %v56
    %v417 = vpop.permute.xlu0 %416
    %419 = vset.pattern.permute.xlu0 3
    %420 = vperm.xlu0 %419, %v57
    %v421 = vpop.permute.xlu0 %420
    %v423 = vlaneseq
    %v424 = vshrl.u32 %v423, 7
    %v425 = vsub.s32 3, %v424
    %v426 = vrot.slane %v58, %v425
    %v427 = vsub.f32 %v417, %v426
    %v428 = vsub.f32 %v421, %v426
    %v429 = vand.u32 2147483647, %v427
    %v430 = vand.u32 2147483647, %v428
    %v431 = vadd.f32 %v413, %v429
    %v432 = vadd.f32 %v414, %v430
    %433 = vset.pattern.permute.xlu0 4
    %434 = vperm.xlu0 %433, %v56
    %v435 = vpop.permute.xlu0 %434
    %437 = vset.pattern.permute.xlu0 4
    %438 = vperm.xlu0 %437, %v57
    %v439 = vpop.permute.xlu0 %438
    %v441 = vlaneseq
    %v442 = vshrl.u32 %v441, 7
    %v443 = vsub.s32 4, %v442
    %v444 = vrot.slane %v58, %v443
    %v445 = vsub.f32 %v435, %v444
    %v446 = vsub.f32 %v439, %v444
    %v447 = vand.u32 2147483647, %v445
    %v448 = vand.u32 2147483647, %v446
    %v449 = vadd.f32 %v431, %v447
    %v450 = vadd.f32 %v432, %v448
    %451 = vset.pattern.permute.xlu0 5
    %452 = vperm.xlu0 %451, %v56
    %v453 = vpop.permute.xlu0 %452
    %455 = vset.pattern.permute.xlu0 5
    %456 = vperm.xlu0 %455, %v57
    %v457 = vpop.permute.xlu0 %456
    %v459 = vlaneseq
    %v460 = vshrl.u32 %v459, 7
    %v461 = vsub.s32 5, %v460
    %v462 = vrot.slane %v58, %v461
    %v463 = vsub.f32 %v453, %v462
    %v464 = vsub.f32 %v457, %v462
    %v465 = vand.u32 2147483647, %v463
    %v466 = vand.u32 2147483647, %v464
    %v467 = vadd.f32 %v449, %v465
    %v468 = vadd.f32 %v450, %v466
    %v469 = vmul.f32 %v56, 0.5
    %v470 = vmul.f32 %v57, 0.5
    %473 = vrot.lane.b32.xlu0 %v469, 125
    %v474 = vpop.permute.xlu0 %473
    %475 = vrot.lane.b32.xlu0 %v470, 125
    %v476 = vpop.permute.xlu0 %475
    %v479 = vsub.f32 %v56, %v474
    %v480 = vsub.f32 %v57, %v476
    %v481 = vadd.f32 %v56, %v474
    %v482 = vadd.f32 %v57, %v476
    %v483 = vmul.f32 %v58, 0.5
    %v485 = vrot.slane %v483, 3
    %v487 = vsub.f32 %v58, %v485
    %v488 = vadd.f32 %v58, %v485
    %490 = vset.pattern.permute.xlu0 0
    %491 = vperm.xlu0 %490, %v481
    %v492 = vpop.permute.xlu0 %491
    %495 = vset.pattern.permute.xlu0 0
    %496 = vperm.xlu0 %495, %v482
    %v497 = vpop.permute.xlu0 %496
    %v499 = vlaneseq
    %v500 = vshrl.u32 %v499, 7
    %v501 = vsub.s32 0, %v500
    %v502 = vrot.slane %v488, %v501
    %v503 = vmin.f32 %v492, %v502
    %v504 = vmin.f32 %v497, %v502
    %506 = vset.pattern.permute.xlu0 0
    %507 = vperm.xlu0 %506, %v479
    %v508 = vpop.permute.xlu0 %507
    %511 = vset.pattern.permute.xlu0 0
    %512 = vperm.xlu0 %511, %v480
    %v513 = vpop.permute.xlu0 %512
    %v515 = vlaneseq
    %v516 = vshrl.u32 %v515, 7
    %v517 = vsub.s32 0, %v516
    %v518 = vrot.slane %v487, %v517
    %v519 = vmax.f32 %v508, %v518
    %v520 = vmax.f32 %v513, %v518
    %v521 = vsub.f32 %v503, %v519
    %v522 = vsub.f32 %v504, %v520
    %v523 = vmax.f32 %v521, 0.0
    %v524 = vmax.f32 %v522, 0.0
    %v525 = vmax.f32 %v492, %v502
    %v526 = vmax.f32 %v497, %v502
    %v527 = vmin.f32 %v508, %v518
    %v528 = vmin.f32 %v513, %v518
    %v529 = vsub.f32 %v525, %v527
    %v530 = vsub.f32 %v526, %v528
    %v531 = vmax.f32 %v529, 0.0
    %v532 = vmax.f32 %v530, 0.0
    %533 = vset.pattern.permute.xlu0 1
    %534 = vperm.xlu0 %533, %v481
    %v535 = vpop.permute.xlu0 %534
    %537 = vset.pattern.permute.xlu0 1
    %538 = vperm.xlu0 %537, %v482
    %v539 = vpop.permute.xlu0 %538
    %v541 = vlaneseq
    %v542 = vshrl.u32 %v541, 7
    %v543 = vsub.s32 1, %v542
    %v544 = vrot.slane %v488, %v543
    %v545 = vmin.f32 %v535, %v544
    %v546 = vmin.f32 %v539, %v544
    %547 = vset.pattern.permute.xlu0 1
    %548 = vperm.xlu0 %547, %v479
    %v549 = vpop.permute.xlu0 %548
    %551 = vset.pattern.permute.xlu0 1
    %552 = vperm.xlu0 %551, %v480
    %v553 = vpop.permute.xlu0 %552
    %v555 = vlaneseq
    %v556 = vshrl.u32 %v555, 7
    %v557 = vsub.s32 1, %v556
    %v558 = vrot.slane %v487, %v557
    %v559 = vmax.f32 %v549, %v558
    %v560 = vmax.f32 %v553, %v558
    %v561 = vsub.f32 %v545, %v559
    %v562 = vsub.f32 %v546, %v560
    %v563 = vmax.f32 %v561, 0.0
    %v564 = vmax.f32 %v562, 0.0
    %v565 = vmul.f32 %v523, %v563
    %v566 = vmul.f32 %v524, %v564
    %v567 = vmax.f32 %v535, %v544
    %v568 = vmax.f32 %v539, %v544
    %v569 = vmin.f32 %v549, %v558
    %v570 = vmin.f32 %v553, %v558
    %v571 = vsub.f32 %v567, %v569
    %v572 = vsub.f32 %v568, %v570
    %v573 = vmax.f32 %v571, 0.0
    %v574 = vmax.f32 %v572, 0.0
    %v575 = vmul.f32 %v531, %v573
    %v576 = vmul.f32 %v532, %v574
    %577 = vset.pattern.permute.xlu0 2
    %578 = vperm.xlu0 %577, %v481
    %v579 = vpop.permute.xlu0 %578
    %581 = vset.pattern.permute.xlu0 2
    %582 = vperm.xlu0 %581, %v482
    %v583 = vpop.permute.xlu0 %582
    %v585 = vlaneseq
    %v586 = vshrl.u32 %v585, 7
    %v587 = vsub.s32 2, %v586
    %v588 = vrot.slane %v488, %v587
    %v589 = vmin.f32 %v579, %v588
    %v590 = vmin.f32 %v583, %v588
    %591 = vset.pattern.permute.xlu0 2
    %592 = vperm.xlu0 %591, %v479
    %v593 = vpop.permute.xlu0 %592
    %595 = vset.pattern.permute.xlu0 2
    %596 = vperm.xlu0 %595, %v480
    %v597 = vpop.permute.xlu0 %596
    %v599 = vlaneseq
    %v600 = vshrl.u32 %v599, 7
    %v601 = vsub.s32 2, %v600
    %v602 = vrot.slane %v487, %v601
    %v603 = vmax.f32 %v593, %v602
    %v604 = vmax.f32 %v597, %v602
    %v605 = vsub.f32 %v589, %v603
    %v606 = vsub.f32 %v590, %v604
    %v607 = vmax.f32 %v605, 0.0
    %v608 = vmax.f32 %v606, 0.0
    %v609 = vmul.f32 %v565, %v607
    %v610 = vmul.f32 %v566, %v608
    %v611 = vmax.f32 %v579, %v588
    %v612 = vmax.f32 %v583, %v588
    %v613 = vmin.f32 %v593, %v602
    %v614 = vmin.f32 %v597, %v602
    %v615 = vsub.f32 %v611, %v613
    %v616 = vsub.f32 %v612, %v614
    %v617 = vmax.f32 %v615, 0.0
    %v618 = vmax.f32 %v616, 0.0
    %v619 = vmul.f32 %v575, %v617
    %v620 = vmul.f32 %v576, %v618
    %621 = vrot.lane.b32.xlu0 %v56, 127
    %v622 = vpop.permute.xlu0 %621
    %623 = vrot.lane.b32.xlu0 %v57, 127
    %v624 = vpop.permute.xlu0 %623
    %v627 = vmul.f32 %v56, %v622
    %v628 = vmul.f32 %v57, %v624
    %629 = vrot.lane.b32.xlu0 %v56, 126
    %v630 = vpop.permute.xlu0 %629
    %631 = vrot.lane.b32.xlu0 %v57, 126
    %v632 = vpop.permute.xlu0 %631
    %v635 = vmul.f32 %v627, %v630
    %v636 = vmul.f32 %v628, %v632
    %v638 = vrot.slane %v58, 1
    %v640 = vmul.f32 %v58, %v638
    %v641 = vrot.slane %v58, 2
    %v643 = vmul.f32 %v640, %v641
    %645 = vset.pattern.permute.xlu0 3
    %646 = vperm.xlu0 %645, %v635
    %v647 = vpop.permute.xlu0 %646
    %650 = vset.pattern.permute.xlu0 3
    %651 = vperm.xlu0 %650, %v636
    %v652 = vpop.permute.xlu0 %651
    %v654 = vlaneseq
    %v655 = vshrl.u32 %v654, 7
    %v656 = vsub.s32 3, %v655
    %v657 = vrot.slane %v643, %v656
    %v658 = vadd.f32 %v647, %v657
    %v659 = vadd.f32 %v652, %v657
    %v660 = vsub.f32 %v658, %v609
    %v661 = vsub.f32 %v659, %v610
    %v662 = vadd.f32 %v660, 1e-07
    %v663 = vadd.f32 %v661, 1e-07
    %v664 = vrcp.pop %v662
    %v665 = vrcp.pop %v663
    %v666 = vadd.f32 %v619, 1e-07
    %v667 = vadd.f32 %v620, 1e-07
    %v668 = vrcp.pop %v666
    %v669 = vrcp.pop %v667
    %v670 = vmul.f32 %v609, %v664
    %v671 = vmul.f32 %v610, %v665
    %v672 = vsub.f32 %v619, %v660
    %v673 = vsub.f32 %v620, %v661
    %v674 = vmul.f32 %v672, %v668
    %v675 = vmul.f32 %v673, %v669
    %v676 = vsub.f32 %v670, %v674
    %v677 = vsub.f32 %v671, %v675
    %v678 = vsub.f32 0.0, %v676
    %v679 = vsub.f32 0.0, %v677
    %v680 = vmul.f32 %v318, 5.0
    %v681 = vmul.f32 %v319, 5.0
    %v682 = vmul.f32 %v183, 2.0
    %v683 = vmul.f32 %v186, 2.0
    %v684 = vadd.f32 %v680, %v682
    %v685 = vadd.f32 %v681, %v683
    %v686 = vmul.f32 %v357, 5.0
    %v687 = vmul.f32 %v358, 5.0
    %v688 = vadd.f32 %v684, %v686
    %v689 = vadd.f32 %v685, %v687
    %v690 = vmul.f32 %v467, 5.0
    %v691 = vmul.f32 %v468, 5.0
    %v692 = vadd.f32 %v688, %v690
    %v693 = vadd.f32 %v689, %v691
    %v694 = vmul.f32 %v678, 2.0
    %v695 = vmul.f32 %v679, 2.0
    %v696 = vadd.f32 %v692, %v694
    %v697 = vadd.f32 %v693, %v695
    %698 = vst [vmem:[#allocation7] sm:$0xff] %v696
    %699 = vst [vmem:[#allocation7 + $0x8] sm:$0xff] %v697
    %s700 = scalar_lea.vmem %s0, 16
    %v701 = vld [vmem:[%s700] sm:$0xff]
    %v702 = vld [vmem:[%s700 + $0x8] sm:$0xff]
    %s703 = scalar_lea.vmem [#allocation2], 4
    %v704 = vld [vmem:[%s703] sm:$0xf]
    %s705 = scalar_lea.vmem %s2, 16
    %v706 = vld [vmem:[%s705] sm:$0xff]
    %v707 = vld [vmem:[%s705 + $0x8] sm:$0xff]
    %s708 = scalar_lea.vmem %s3, 8
    %v709 = vld [vmem:[%s708] sm:$0x3f]
    %s710 = scalar_lea.vmem [#allocation5], 8
    %v711 = vld [vmem:[%s710] sm:$0xf]
    %v712 = vld [vmem:[%s710 + $0x4] sm:$0xf]
    %v713 = vunpack.c.l.bf16 %v711
    %v714 = vunpack.c.l.bf16 %v712
    %s715 = scalar_lea.vmem %s5, 64
    %v716 = vld [vmem:[%s715] sm:$0xf]
    %v717 = vld [vmem:[%s715 + $0x4] sm:$0xf]
    %v718 = vld [vmem:[%s715 + $0x8] sm:$0xf]
    %v719 = vld [vmem:[%s715 + $0xc] sm:$0xf]
    %v720 = vld [vmem:[%s715 + $0x10] sm:$0xf]
    %v721 = vld [vmem:[%s715 + $0x14] sm:$0xf]
    %v722 = vld [vmem:[%s715 + $0x18] sm:$0xf]
    %v723 = vld [vmem:[%s715 + $0x1c] sm:$0xf]
    %v724 = vld [vmem:[%s715 + $0x20] sm:$0xf]
    %v725 = vld [vmem:[%s715 + $0x24] sm:$0xf]
    %v726 = vld [vmem:[%s715 + $0x28] sm:$0xf]
    %v727 = vld [vmem:[%s715 + $0x2c] sm:$0xf]
    %v728 = vld [vmem:[%s715 + $0x30] sm:$0xf]
    %v729 = vld [vmem:[%s715 + $0x34] sm:$0xf]
    %v730 = vld [vmem:[%s715 + $0x38] sm:$0xf]
    %v731 = vld [vmem:[%s715 + $0x3c] sm:$0xf]
    %v732 = vunpack.c.l.bf16 %v716
    %v733 = vunpack.c.l.bf16 %v717
    %v734 = vunpack.c.l.bf16 %v718
    %v735 = vunpack.c.l.bf16 %v719
    %v736 = vunpack.c.l.bf16 %v720
    %v737 = vunpack.c.l.bf16 %v721
    %v738 = vunpack.c.l.bf16 %v722
    %v739 = vunpack.c.l.bf16 %v723
    %v740 = vunpack.c.l.bf16 %v724
    %v741 = vunpack.c.l.bf16 %v725
    %v742 = vunpack.c.l.bf16 %v726
    %v743 = vunpack.c.l.bf16 %v727
    %v744 = vunpack.c.l.bf16 %v728
    %v745 = vunpack.c.l.bf16 %v729
    %v746 = vunpack.c.l.bf16 %v730
    %v747 = vunpack.c.l.bf16 %v731
    %v748 = vsub.f32 0.0, %v701
    %v749 = vsub.f32 0.0, %v702
    %v750 = vmul.f32 %v748, 1.442695
    %v751 = vpow.pop %v750
    %v752 = vmul.f32 %v749, 1.442695
    %v753 = vpow.pop %v752
    %v754 = vadd.f32 %v751, 1.0
    %v755 = vadd.f32 %v753, 1.0
    %v756 = vrcp.pop %v754
    %v757 = vmul.f32 1.0, %v756
    %v758 = vrcp.pop %v755
    %v759 = vmul.f32 1.0, %v758
    %v760 = vmul.f32 %v757, %v757
    %v761 = vmul.f32 %v759, %v759
    %v762 = vsub.f32 1.0, %v757
    %v763 = vsub.f32 1.0, %v759
    %v764 = vmul.f32 %v762, %v762
    %v765 = vmul.f32 %v763, %v763
    %v766 = vmul.f32 %v760, 0.75
    %v767 = vmul.f32 %v761, 0.75
    %v768 = vadd.f32 %v762, 1e-08
    %v769 = vadd.f32 %v763, 1e-08
    %v770 = vlog2.pop %v768
    %v771 = vmul.f32 %v770, 0.6931472
    %v772 = vlog2.pop %v769
    %v773 = vmul.f32 %v772, 0.6931472
    %v774 = vsub.f32 0.0, %v771
    %v775 = vsub.f32 0.0, %v773
    %v776 = vmul.f32 %v766, %v774
    %v777 = vmul.f32 %v767, %v775
    %v778 = vmul.f32 %v764, 0.25
    %v779 = vmul.f32 %v765, 0.25
    %v780 = vadd.f32 %v757, 1e-08
    %v781 = vadd.f32 %v759, 1e-08
    %v782 = vlog2.pop %v780
    %v783 = vmul.f32 %v782, 0.6931472
    %v784 = vlog2.pop %v781
    %v785 = vmul.f32 %v784, 0.6931472
    %v786 = vsub.f32 0.0, %v783
    %v787 = vsub.f32 0.0, %v785
    %v788 = vmul.f32 %v778, %v786
    %v789 = vmul.f32 %v779, %v787
    %v790 = vsub.f32 %v788, %v776
    %v791 = vsub.f32 %v789, %v777
    %v792 = vpack.c.bf16 %v791, %v790
    %v794 = vsel %vm140, %v792, 0
    %v797 = vsel %vm144, %v704, 0
    %799 = vmatprep.subr.bf16.mxu0 0
    %800 = vmatpush1.bf16.msra.mxu0 0
    %801 = vmatprep.subr.bf16.mxu0 0
    %802 = vmatpush1.bf16.msra.mxu0 0
    %803 = vmatprep.subr.bf16.mxu0 0
    %804 = vmatpush1.bf16.msra.mxu0 0
    %805 = vmatprep.subr.bf16.mxu0 0
    %806 = vmatpush1.bf16.msra.mxu0 0
    %807 = vmatprep.subr.bf16.mxu0 0
    %808 = vmatpush1.bf16.msra.mxu0 0
    %809 = vmatprep.subr.bf16.mxu0 0
    %810 = vmatpush1.bf16.msra.mxu0 0
    %811 = vmatprep.subr.bf16.mxu0 0
    %812 = vmatpush1.bf16.msra.mxu0 0
    %813 = vmatprep.subr.bf16.mxu0 0
    %814 = vmatpush1.bf16.msra.mxu0 %v797
    %815 = vmatprep.subr.bf16.mxu0 0
    %816 = vmatpush2.bf16.msra.mxu0 0
    %817 = vmatprep.subr.bf16.mxu0 0
    %818 = vmatpush2.bf16.msra.mxu0 0
    %819 = vmatprep.subr.bf16.mxu0 0
    %820 = vmatpush2.bf16.msra.mxu0 0
    %821 = vmatprep.subr.bf16.mxu0 0
    %822 = vmatpush2.bf16.msra.mxu0 0
    %823 = vmatprep.subr.bf16.mxu0 0
    %824 = vmatpush2.bf16.msra.mxu0 0
    %825 = vmatprep.subr.bf16.mxu0 0
    %826 = vmatpush2.bf16.msra.mxu0 0
    %827 = vmatprep.subr.bf16.mxu0 0
    %828 = vmatpush2.bf16.msra.mxu0 0
    %829 = vmatprep.subr.bf16.mxu0 0
    %830 = vmatpush2.bf16.msra.mxu0 0
    %831 = vmatprep.mubr.bf16.mxu0 0
    %832 = vmatmul.mubr.bf16.gmra.mxu0 %v794
    %v833 = vpop.f32.mrf.mxu0
    %v834 = vadd.f32 0.0, %v833
    %v835 = vpop.f32.mrf.mxu0
    %v836 = vpop.f32.mrf.mxu0
    %v837 = vadd.f32 0.0, %v836
    %v838 = vpop.f32.mrf.mxu0
    %839 = vdwg.mxu0
    %v840 = vsub.f32 0.0, %v713
    %v841 = vsub.f32 0.0, %v714
    %v842 = vmul.f32 %v840, 1.442695
    %v843 = vpow.pop %v842
    %v844 = vmul.f32 %v841, 1.442695
    %v845 = vpow.pop %v844
    %v846 = vadd.f32 %v843, 1.0
    %v847 = vadd.f32 %v845, 1.0
    %v848 = vrcp.pop %v846
    %v849 = vrcp.pop %v847
    %v850 = vmax.f32 %v713, 0.0
    %v851 = vmax.f32 %v714, 0.0
    %vm852 = vcmp.ge.f32.partialorder %v713, 0.0
    %vm853 = vcmp.ge.f32.partialorder %v714, 0.0
    %v854 = vsub.f32 1.0, %v848
    %v855 = vsub.f32 1.0, %v849
    %v856 = vsel %vm852, %v848, %v854
    %v857 = vsel %vm853, %v849, %v855
    %v858 = vlog2.pop %v856
    %v859 = vmul.f32 %v858, 0.6931472
    %v860 = vlog2.pop %v857
    %v861 = vmul.f32 %v860, 0.6931472
    %v862 = vsub.f32 %v850, %v859
    %v863 = vsub.f32 %v851, %v861
    %v864 = vpack.c.bf16 %v841, %v840
    %v865 = vpack.c.bf16 %v849, %v848
    %v882 = vunpack.c.l.b16 %v716
    %v883 = vunpack.c.l.b16 %v717
    %v884 = vunpack.c.l.b16 %v718
    %v885 = vunpack.c.l.b16 %v719
    %v886 = vunpack.c.l.b16 %v720
    %v887 = vunpack.c.l.b16 %v721
    %v888 = vunpack.c.l.b16 %v722
    %v889 = vunpack.c.l.b16 %v723
    %v890 = vunpack.c.l.b16 %v724
    %v891 = vunpack.c.l.b16 %v725
    %v892 = vunpack.c.l.b16 %v726
    %v893 = vunpack.c.l.b16 %v727
    %v894 = vunpack.c.l.b16 %v728
    %v895 = vunpack.c.l.b16 %v729
    %v896 = vunpack.c.l.b16 %v730
    %v897 = vunpack.c.l.b16 %v731
    %v898 = vpack.c.b16 %v883, %v882
    %v899 = vpack.c.b16 %v885, %v884
    %v900 = vpack.c.b16 %v887, %v886
    %v901 = vpack.c.b16 %v889, %v888
    %v902 = vpack.c.b16 %v891, %v890
    %v903 = vpack.c.b16 %v893, %v892
    %v904 = vpack.c.b16 %v895, %v894
    %v905 = vpack.c.b16 %v897, %v896
    %914 = vmatprep.subr.bf16.mxu0 0
    %915 = vmatpush1.bf16.msra.mxu0 %v905
    %916 = vmatprep.subr.bf16.mxu0 0
    %917 = vmatpush1.bf16.msra.mxu0 %v904
    %918 = vmatprep.subr.bf16.mxu0 0
    %919 = vmatpush1.bf16.msra.mxu0 %v903
    %920 = vmatprep.subr.bf16.mxu0 0
    %921 = vmatpush1.bf16.msra.mxu0 %v902
    %922 = vmatprep.subr.bf16.mxu0 0
    %923 = vmatpush1.bf16.msra.mxu0 %v901
    %924 = vmatprep.subr.bf16.mxu0 0
    %925 = vmatpush1.bf16.msra.mxu0 %v900
    %926 = vmatprep.subr.bf16.mxu0 0
    %927 = vmatpush1.bf16.msra.mxu0 %v899
    %928 = vmatprep.subr.bf16.mxu0 0
    %929 = vmatpush1.bf16.msra.mxu0 %v898
    %930 = vmatprep.subr.bf16.mxu0 0
    %931 = vmatpush2.bf16.msra.mxu0 0
    %932 = vmatprep.subr.bf16.mxu0 0
    %933 = vmatpush2.bf16.msra.mxu0 0
    %934 = vmatprep.subr.bf16.mxu0 0
    %935 = vmatpush2.bf16.msra.mxu0 0
    %936 = vmatprep.subr.bf16.mxu0 0
    %937 = vmatpush2.bf16.msra.mxu0 0
    %938 = vmatprep.subr.bf16.mxu0 0
    %939 = vmatpush2.bf16.msra.mxu0 0
    %940 = vmatprep.subr.bf16.mxu0 0
    %941 = vmatpush2.bf16.msra.mxu0 0
    %942 = vmatprep.subr.bf16.mxu0 0
    %943 = vmatpush2.bf16.msra.mxu0 0
    %944 = vmatprep.subr.bf16.mxu0 0
    %945 = vmatpush2.bf16.msra.mxu0 0
    %946 = vmatprep.mubr.bf16.mxu0 0
    %947 = vmatmul.mubr.bf16.gmra.mxu0 %v864
    %v948 = vpop.f32.mrf.mxu0
    %v949 = vadd.f32 0.0, %v948
    %v950 = vpop.f32.mrf.mxu0
    %v951 = vpop.f32.mrf.mxu0
    %v952 = vadd.f32 0.0, %v951
    %v953 = vpop.f32.mrf.mxu0
    %954 = vmatprep.mubr.bf16.mxu0 0
    %955 = vmatmul.mubr.bf16.gmra.mxu0 %v865
    %v956 = vpop.f32.mrf.mxu0
    %v957 = vadd.f32 0.0, %v956
    %v958 = vpop.f32.mrf.mxu0
    %v959 = vpop.f32.mrf.mxu0
    %v960 = vadd.f32 0.0, %v959
    %v961 = vpop.f32.mrf.mxu0
    %962 = vdwg.mxu0
    %963 = vadd.xlane.f32.xlu0 %v862
    %v964 = vpop.xlane.xlu0 %963
    %965 = vadd.xlane.f32.xlu0 %v863
    %v966 = vpop.xlane.xlu0 %965
    %v967 = vadd.f32 %v949, %v964
    %v968 = vadd.f32 %v952, %v966
    %v969 = vmul.f32 %v967, 0.0078125
    %v970 = vmul.f32 %v968, 0.0078125
    %971 = vadd.xlane.f32.xlu0 %v848
    %v972 = vpop.xlane.xlu0 %971
    %973 = vadd.xlane.f32.xlu0 %v849
    %v974 = vpop.xlane.xlu0 %973
    %v975 = vadd.f32 %v732, %v733
    %v976 = vadd.f32 %v975, %v734
    %v977 = vadd.f32 %v976, %v735
    %v978 = vadd.f32 %v977, %v736
    %v979 = vadd.f32 %v978, %v737
    %v980 = vadd.f32 %v979, %v738
    %v981 = vadd.f32 %v980, %v739
    %v982 = vadd.f32 %v981, %v740
    %v983 = vadd.f32 %v982, %v741
    %v984 = vadd.f32 %v983, %v742
    %v985 = vadd.f32 %v984, %v743
    %v986 = vadd.f32 %v985, %v744
    %v987 = vadd.f32 %v986, %v745
    %v988 = vadd.f32 %v987, %v746
    %v989 = vadd.f32 %v988, %v747
    %v990 = vrot.slane %v989, 4
    %v991 = vadd.f32 %v989, %v990
    %v992 = vrot.slane %v991, 2
    %v993 = vadd.f32 %v991, %v992
    %v994 = vrot.slane %v993, 1
    %v995 = vadd.f32 %v993, %v994
    %v996 = vadd.f32 %v972, %v995
    %v997 = vadd.f32 %v974, %v995
    %v998 = vmul.f32 %v957, 2.0
    %v999 = vmul.f32 %v960, 2.0
    %v1000 = vadd.f32 %v998, 1.0
    %v1001 = vadd.f32 %v999, 1.0
    %v1002 = vadd.f32 %v996, 1.0
    %v1003 = vadd.f32 %v997, 1.0
    %v1004 = vrcp.pop %v1002
    %v1005 = vrcp.pop %v1003
    %v1006 = vmul.f32 %v1000, %v1004
    %v1007 = vmul.f32 %v1001, %v1005
    %v1008 = vsub.f32 1.0, %v1006
    %v1009 = vsub.f32 1.0, %v1007
    %1011 = vset.pattern.permute.xlu0 0
    %1012 = vperm.xlu0 %1011, %v706
    %v1013 = vpop.permute.xlu0 %1012
    %1016 = vset.pattern.permute.xlu0 0
    %1017 = vperm.xlu0 %1016, %v707
    %v1018 = vpop.permute.xlu0 %1017
    %v1020 = vlaneseq
    %v1021 = vshrl.u32 %v1020, 7
    %v1022 = vsub.s32 0, %v1021
    %v1023 = vrot.slane %v709, %v1022
    %v1024 = vsub.f32 %v1013, %v1023
    %v1025 = vsub.f32 %v1018, %v1023
    %v1026 = vand.u32 2147483647, %v1024
    %v1027 = vand.u32 2147483647, %v1025
    %v1028 = vadd.f32 %v1026, 0.0
    %v1029 = vadd.f32 %v1027, 0.0
    %1030 = vset.pattern.permute.xlu0 1
    %1031 = vperm.xlu0 %1030, %v706
    %v1032 = vpop.permute.xlu0 %1031
    %1034 = vset.pattern.permute.xlu0 1
    %1035 = vperm.xlu0 %1034, %v707
    %v1036 = vpop.permute.xlu0 %1035
    %v1038 = vlaneseq
    %v1039 = vshrl.u32 %v1038, 7
    %v1040 = vsub.s32 1, %v1039
    %v1041 = vrot.slane %v709, %v1040
    %v1042 = vsub.f32 %v1032, %v1041
    %v1043 = vsub.f32 %v1036, %v1041
    %v1044 = vand.u32 2147483647, %v1042
    %v1045 = vand.u32 2147483647, %v1043
    %v1046 = vadd.f32 %v1028, %v1044
    %v1047 = vadd.f32 %v1029, %v1045
    %1048 = vset.pattern.permute.xlu0 2
    %1049 = vperm.xlu0 %1048, %v706
    %v1050 = vpop.permute.xlu0 %1049
    %1052 = vset.pattern.permute.xlu0 2
    %1053 = vperm.xlu0 %1052, %v707
    %v1054 = vpop.permute.xlu0 %1053
    %v1056 = vlaneseq
    %v1057 = vshrl.u32 %v1056, 7
    %v1058 = vsub.s32 2, %v1057
    %v1059 = vrot.slane %v709, %v1058
    %v1060 = vsub.f32 %v1050, %v1059
    %v1061 = vsub.f32 %v1054, %v1059
    %v1062 = vand.u32 2147483647, %v1060
    %v1063 = vand.u32 2147483647, %v1061
    %v1064 = vadd.f32 %v1046, %v1062
    %v1065 = vadd.f32 %v1047, %v1063
    %1066 = vset.pattern.permute.xlu0 3
    %1067 = vperm.xlu0 %1066, %v706
    %v1068 = vpop.permute.xlu0 %1067
    %1070 = vset.pattern.permute.xlu0 3
    %1071 = vperm.xlu0 %1070, %v707
    %v1072 = vpop.permute.xlu0 %1071
    %v1074 = vlaneseq
    %v1075 = vshrl.u32 %v1074, 7
    %v1076 = vsub.s32 3, %v1075
    %v1077 = vrot.slane %v709, %v1076
    %v1078 = vsub.f32 %v1068, %v1077
    %v1079 = vsub.f32 %v1072, %v1077
    %v1080 = vand.u32 2147483647, %v1078
    %v1081 = vand.u32 2147483647, %v1079
    %v1082 = vadd.f32 %v1064, %v1080
    %v1083 = vadd.f32 %v1065, %v1081
    %1084 = vset.pattern.permute.xlu0 4
    %1085 = vperm.xlu0 %1084, %v706
    %v1086 = vpop.permute.xlu0 %1085
    %1088 = vset.pattern.permute.xlu0 4
    %1089 = vperm.xlu0 %1088, %v707
    %v1090 = vpop.permute.xlu0 %1089
    %v1092 = vlaneseq
    %v1093 = vshrl.u32 %v1092, 7
    %v1094 = vsub.s32 4, %v1093
    %v1095 = vrot.slane %v709, %v1094
    %v1096 = vsub.f32 %v1086, %v1095
    %v1097 = vsub.f32 %v1090, %v1095
    %v1098 = vand.u32 2147483647, %v1096
    %v1099 = vand.u32 2147483647, %v1097
    %v1100 = vadd.f32 %v1082, %v1098
    %v1101 = vadd.f32 %v1083, %v1099
    %1102 = vset.pattern.permute.xlu0 5
    %1103 = vperm.xlu0 %1102, %v706
    %v1104 = vpop.permute.xlu0 %1103
    %1106 = vset.pattern.permute.xlu0 5
    %1107 = vperm.xlu0 %1106, %v707
    %v1108 = vpop.permute.xlu0 %1107
    %v1110 = vlaneseq
    %v1111 = vshrl.u32 %v1110, 7
    %v1112 = vsub.s32 5, %v1111
    %v1113 = vrot.slane %v709, %v1112
    %v1114 = vsub.f32 %v1104, %v1113
    %v1115 = vsub.f32 %v1108, %v1113
    %v1116 = vand.u32 2147483647, %v1114
    %v1117 = vand.u32 2147483647, %v1115
    %v1118 = vadd.f32 %v1100, %v1116
    %v1119 = vadd.f32 %v1101, %v1117
    %v1120 = vmul.f32 %v706, 0.5
    %v1121 = vmul.f32 %v707, 0.5
    %1124 = vrot.lane.b32.xlu0 %v1120, 125
    %v1125 = vpop.permute.xlu0 %1124
    %1126 = vrot.lane.b32.xlu0 %v1121, 125
    %v1127 = vpop.permute.xlu0 %1126
    %v1130 = vsub.f32 %v706, %v1125
    %v1131 = vsub.f32 %v707, %v1127
    %v1132 = vadd.f32 %v706, %v1125
    %v1133 = vadd.f32 %v707, %v1127
    %v1134 = vmul.f32 %v709, 0.5
    %v1136 = vrot.slane %v1134, 3
    %v1138 = vsub.f32 %v709, %v1136
    %v1139 = vadd.f32 %v709, %v1136
    %1141 = vset.pattern.permute.xlu0 0
    %1142 = vperm.xlu0 %1141, %v1132
    %v1143 = vpop.permute.xlu0 %1142
    %1146 = vset.pattern.permute.xlu0 0
    %1147 = vperm.xlu0 %1146, %v1133
    %v1148 = vpop.permute.xlu0 %1147
    %v1150 = vlaneseq
    %v1151 = vshrl.u32 %v1150, 7
    %v1152 = vsub.s32 0, %v1151
    %v1153 = vrot.slane %v1139, %v1152
    %v1154 = vmin.f32 %v1143, %v1153
    %v1155 = vmin.f32 %v1148, %v1153
    %1157 = vset.pattern.permute.xlu0 0
    %1158 = vperm.xlu0 %1157, %v1130
    %v1159 = vpop.permute.xlu0 %1158
    %1162 = vset.pattern.permute.xlu0 0
    %1163 = vperm.xlu0 %1162, %v1131
    %v1164 = vpop.permute.xlu0 %1163
    %v1166 = vlaneseq
    %v1167 = vshrl.u32 %v1166, 7
    %v1168 = vsub.s32 0, %v1167
    %v1169 = vrot.slane %v1138, %v1168
    %v1170 = vmax.f32 %v1159, %v1169
    %v1171 = vmax.f32 %v1164, %v1169
    %v1172 = vsub.f32 %v1154, %v1170
    %v1173 = vsub.f32 %v1155, %v1171
    %v1174 = vmax.f32 %v1172, 0.0
    %v1175 = vmax.f32 %v1173, 0.0
    %v1176 = vmax.f32 %v1143, %v1153
    %v1177 = vmax.f32 %v1148, %v1153
    %v1178 = vmin.f32 %v1159, %v1169
    %v1179 = vmin.f32 %v1164, %v1169
    %v1180 = vsub.f32 %v1176, %v1178
    %v1181 = vsub.f32 %v1177, %v1179
    %v1182 = vmax.f32 %v1180, 0.0
    %v1183 = vmax.f32 %v1181, 0.0
    %1184 = vset.pattern.permute.xlu0 1
    %1185 = vperm.xlu0 %1184, %v1132
    %v1186 = vpop.permute.xlu0 %1185
    %1188 = vset.pattern.permute.xlu0 1
    %1189 = vperm.xlu0 %1188, %v1133
    %v1190 = vpop.permute.xlu0 %1189
    %v1192 = vlaneseq
    %v1193 = vshrl.u32 %v1192, 7
    %v1194 = vsub.s32 1, %v1193
    %v1195 = vrot.slane %v1139, %v1194
    %v1196 = vmin.f32 %v1186, %v1195
    %v1197 = vmin.f32 %v1190, %v1195
    %1198 = vset.pattern.permute.xlu0 1
    %1199 = vperm.xlu0 %1198, %v1130
    %v1200 = vpop.permute.xlu0 %1199
    %1202 = vset.pattern.permute.xlu0 1
    %1203 = vperm.xlu0 %1202, %v1131
    %v1204 = vpop.permute.xlu0 %1203
    %v1206 = vlaneseq
    %v1207 = vshrl.u32 %v1206, 7
    %v1208 = vsub.s32 1, %v1207
    %v1209 = vrot.slane %v1138, %v1208
    %v1210 = vmax.f32 %v1200, %v1209
    %v1211 = vmax.f32 %v1204, %v1209
    %v1212 = vsub.f32 %v1196, %v1210
    %v1213 = vsub.f32 %v1197, %v1211
    %v1214 = vmax.f32 %v1212, 0.0
    %v1215 = vmax.f32 %v1213, 0.0
    %v1216 = vmul.f32 %v1174, %v1214
    %v1217 = vmul.f32 %v1175, %v1215
    %v1218 = vmax.f32 %v1186, %v1195
    %v1219 = vmax.f32 %v1190, %v1195
    %v1220 = vmin.f32 %v1200, %v1209
    %v1221 = vmin.f32 %v1204, %v1209
    %v1222 = vsub.f32 %v1218, %v1220
    %v1223 = vsub.f32 %v1219, %v1221
    %v1224 = vmax.f32 %v1222, 0.0
    %v1225 = vmax.f32 %v1223, 0.0
    %v1226 = vmul.f32 %v1182, %v1224
    %v1227 = vmul.f32 %v1183, %v1225
    %1228 = vset.pattern.permute.xlu0 2
    %1229 = vperm.xlu0 %1228, %v1132
    %v1230 = vpop.permute.xlu0 %1229
    %1232 = vset.pattern.permute.xlu0 2
    %1233 = vperm.xlu0 %1232, %v1133
    %v1234 = vpop.permute.xlu0 %1233
    %v1236 = vlaneseq
    %v1237 = vshrl.u32 %v1236, 7
    %v1238 = vsub.s32 2, %v1237
    %v1239 = vrot.slane %v1139, %v1238
    %v1240 = vmin.f32 %v1230, %v1239
    %v1241 = vmin.f32 %v1234, %v1239
    %1242 = vset.pattern.permute.xlu0 2
    %1243 = vperm.xlu0 %1242, %v1130
    %v1244 = vpop.permute.xlu0 %1243
    %1246 = vset.pattern.permute.xlu0 2
    %1247 = vperm.xlu0 %1246, %v1131
    %v1248 = vpop.permute.xlu0 %1247
    %v1250 = vlaneseq
    %v1251 = vshrl.u32 %v1250, 7
    %v1252 = vsub.s32 2, %v1251
    %v1253 = vrot.slane %v1138, %v1252
    %v1254 = vmax.f32 %v1244, %v1253
    %v1255 = vmax.f32 %v1248, %v1253
    %v1256 = vsub.f32 %v1240, %v1254
    %v1257 = vsub.f32 %v1241, %v1255
    %v1258 = vmax.f32 %v1256, 0.0
    %v1259 = vmax.f32 %v1257, 0.0
    %v1260 = vmul.f32 %v1216, %v1258
    %v1261 = vmul.f32 %v1217, %v1259
    %v1262 = vmax.f32 %v1230, %v1239
    %v1263 = vmax.f32 %v1234, %v1239
    %v1264 = vmin.f32 %v1244, %v1253
    %v1265 = vmin.f32 %v1248, %v1253
    %v1266 = vsub.f32 %v1262, %v1264
    %v1267 = vsub.f32 %v1263, %v1265
    %v1268 = vmax.f32 %v1266, 0.0
    %v1269 = vmax.f32 %v1267, 0.0
    %v1270 = vmul.f32 %v1226, %v1268
    %v1271 = vmul.f32 %v1227, %v1269
    %1272 = vrot.lane.b32.xlu0 %v706, 127
    %v1273 = vpop.permute.xlu0 %1272
    %1274 = vrot.lane.b32.xlu0 %v707, 127
    %v1275 = vpop.permute.xlu0 %1274
    %v1278 = vmul.f32 %v706, %v1273
    %v1279 = vmul.f32 %v707, %v1275
    %1280 = vrot.lane.b32.xlu0 %v706, 126
    %v1281 = vpop.permute.xlu0 %1280
    %1282 = vrot.lane.b32.xlu0 %v707, 126
    %v1283 = vpop.permute.xlu0 %1282
    %v1286 = vmul.f32 %v1278, %v1281
    %v1287 = vmul.f32 %v1279, %v1283
    %v1289 = vrot.slane %v709, 1
    %v1291 = vmul.f32 %v709, %v1289
    %v1292 = vrot.slane %v709, 2
    %v1294 = vmul.f32 %v1291, %v1292
    %1296 = vset.pattern.permute.xlu0 3
    %1297 = vperm.xlu0 %1296, %v1286
    %v1298 = vpop.permute.xlu0 %1297
    %1301 = vset.pattern.permute.xlu0 3
    %1302 = vperm.xlu0 %1301, %v1287
    %v1303 = vpop.permute.xlu0 %1302
    %v1305 = vlaneseq
    %v1306 = vshrl.u32 %v1305, 7
    %v1307 = vsub.s32 3, %v1306
    %v1308 = vrot.slane %v1294, %v1307
    %v1309 = vadd.f32 %v1298, %v1308
    %v1310 = vadd.f32 %v1303, %v1308
    %v1311 = vsub.f32 %v1309, %v1260
    %v1312 = vsub.f32 %v1310, %v1261
    %v1313 = vadd.f32 %v1311, 1e-07
    %v1314 = vadd.f32 %v1312, 1e-07
    %v1315 = vrcp.pop %v1313
    %v1316 = vrcp.pop %v1314
    %v1317 = vadd.f32 %v1270, 1e-07
    %v1318 = vadd.f32 %v1271, 1e-07
    %v1319 = vrcp.pop %v1317
    %v1320 = vrcp.pop %v1318
    %v1321 = vmul.f32 %v1260, %v1315
    %v1322 = vmul.f32 %v1261, %v1316
    %v1323 = vsub.f32 %v1270, %v1311
    %v1324 = vsub.f32 %v1271, %v1312
    %v1325 = vmul.f32 %v1323, %v1319
    %v1326 = vmul.f32 %v1324, %v1320
    %v1327 = vsub.f32 %v1321, %v1325
    %v1328 = vsub.f32 %v1322, %v1326
    %v1329 = vsub.f32 0.0, %v1327
    %v1330 = vsub.f32 0.0, %v1328
    %v1331 = vmul.f32 %v969, 5.0
    %v1332 = vmul.f32 %v970, 5.0
    %v1333 = vmul.f32 %v834, 2.0
    %v1334 = vmul.f32 %v837, 2.0
    %v1335 = vadd.f32 %v1331, %v1333
    %v1336 = vadd.f32 %v1332, %v1334
    %v1337 = vmul.f32 %v1008, 5.0
    %v1338 = vmul.f32 %v1009, 5.0
    %v1339 = vadd.f32 %v1335, %v1337
    %v1340 = vadd.f32 %v1336, %v1338
    %v1341 = vmul.f32 %v1118, 5.0
    %v1342 = vmul.f32 %v1119, 5.0
    %v1343 = vadd.f32 %v1339, %v1341
    %v1344 = vadd.f32 %v1340, %v1342
    %v1345 = vmul.f32 %v1329, 2.0
    %v1346 = vmul.f32 %v1330, 2.0
    %v1347 = vadd.f32 %v1343, %v1345
    %v1348 = vadd.f32 %v1344, %v1346
    %s1349 = scalar_lea.vmem [#allocation7], 16
    %1350 = vst [vmem:[%s1349] sm:$0xff] %v1347
    %1351 = vst [vmem:[%s1349 + $0x8] sm:$0xff] %v1348
    // Predicated region
    $region34: #{tpu_custom_call.1} parent=1 // pred_check
      _
    $region35: #{tpu_custom_call.1} parent=1 // pred_check_branch
      %1353 = sbr.rel (0) target = $region37
    $region36: #{tpu_custom_call.1} parent=1 // pred_region
      %s1355 = ssub.s32 512, 512
      %1356 = vsyncadd [#allocation4], %s1355
      %s1357 = sshll.u32 [#allocation7], 4
      %s1358 = int_to_ptr.vmem [resolvable:$true] %s1357
      %1363 = dma.vmem_to_hbm [thread:$0]  %s1358, 512, %s6, [#allocation4], 128, 128, 8
    $region37: #{tpu_custom_call.1} parent=1 // pred_fallthru
      _
    // Predicated region
    $region38: #{tpu_custom_call.1} parent=1 // pred_check
      _
    $region39: #{tpu_custom_call.1} parent=1 // pred_check_branch
      %1365 = sbr.rel (0) target = $region41
    $region40: #{tpu_custom_call.1} parent=1 // pred_region
      %1366 = dma.done [#allocation4], 512
    $region41: #{tpu_custom_call.1} parent=1 // pred_fallthru
      _
    %1367 = vsyncpa [#allocation3], 1
    %1368 = vsyncpa [#allocation6], 1
    %1369 = vsyncpa [#allocation4], 1

</llo_original>
